<compile_context>
chip_gen: v5e
topology: v5e:2x2
jax: 0.10.0
libtpu: 0.0.40
codegen_flags: <defaults>
</compile_context>

<pallas_src>
import functools

import jax
import jax.numpy as jnp
from jax.experimental import pallas as pl
from jax.experimental.pallas import tpu as pltpu


def _round_up(n: int, m: int) -> int:
    return ((n + m - 1) // m) * m


# ----------------------------------------------------------------------------
# Pallas kernel (order / rank are static; rank is a multiple of 8 after packing)
# ----------------------------------------------------------------------------
def _make_kernel(order: int, rank: int, live_rows_cap: int):
    """refs = (xt, const, I_all, O_all, G_0..G_{order-1},     # inputs
               y,                                             # output
               z_scratch, t_scratch[, kron_scratch])          # VMEM scratch"""

    def kernel(*refs):
        xt_ref, const_ref, i_all_ref, o_all_ref = refs[:4]
        g_refs = refs[4:4 + order]
        y_ref = refs[4 + order]
        z_ref = refs[5 + order]                        # (R_tot, TB)      f32
        t_ref = refs[6 + order]                        # (order*rank, TB) f32
        ks_ref = refs[7 + order] if order >= 2 else None   # (rank**order, TB)

        # --- ONE tall MXU matmul for every Z[i][j]; streamed into VMEM -------
        # rows [roff_i + j*rank : roff_i + (j+1)*rank]  ==  Is[i][j] @ X.T
        z_ref[...] = jnp.dot(i_all_ref[...], xt_ref[...],
                             preferred_element_type=jnp.float32)

        roff = 0
        for i in range(order):
            if i == 0:
                # T_0 = G_0 @ Z_0
                t_ref[pl.ds(0, rank), :] = jnp.dot(
                    g_refs[0][...], z_ref[pl.ds(0, rank), :],
                    preferred_element_type=jnp.float32)
            else:
                # ---- chunked Khatri-Rao / Kronecker build, straight to VMEM --
                # kron row index = a_i*rank^i + ... + a_1*rank + a_0
                z0 = z_ref[pl.ds(roff, rank), :]                   # (rank, TB)
                z1 = z_ref[pl.ds(roff + rank, rank), :]
                # level 1: rank-row chunks written from values (no aliasing)
                for a in range(rank):
                    ks_ref[pl.ds(a * rank, rank), :] = z1[a:a + 1, :] * z0
                # levels 2..i: expand the prefix IN PLACE inside the scratch;
                # block a == 0 is written last so it can update in place.
                for j in range(2, i + 1):
                    rows_prev = rank ** j
                    zj = z_ref[pl.ds(roff + j * rank, rank), :]
                    sub = rows_prev
                    if sub > live_rows_cap:
                        sub = max(s for s in range(8, live_rows_cap + 1, 8)
                                  if rows_prev % s == 0)
                    nsub = rows_prev // sub
                    for a in reversed(range(rank)):
                        za = zj[a:a + 1, :]
                        for c in range(nsub):
                            ks_ref[pl.ds(a * rows_prev + c * sub, sub), :] = (
                                za * ks_ref[pl.ds(c * sub, sub), :])
                # ---- G_i @ kron_i : kept in f32 (precision sensitive) --------
                t_ref[pl.ds(i * rank, rank), :] = jnp.dot(
                    g_refs[i][...], ks_ref[pl.ds(0, rank ** (i + 1)), :],
                    preferred_element_type=jnp.float32)
            roff += (i + 1) * rank

        # --- ONE fused output projection over all orders (f32 all the way) ---
        y = jnp.dot(o_all_ref[...], t_ref[...], preferred_element_type=jnp.float32)
        y_ref[...] = (y + const_ref[...]).astype(y_ref.dtype)

    return kernel


# ----------------------------------------------------------------------------
# One-time weight packing: pad rank to a multiple of 8, fuse I / O weights.
# ----------------------------------------------------------------------------
def pack_params(const, Is, Os, Gs, *, compute_dtype=jnp.bfloat16):
    order = len(Os)
    _, rank = Os[0].shape
    in_features = Is[0].shape[2]
    rank_p = _round_up(rank, 8)

    Is = [jnp.asarray(I, jnp.float32) for I in Is]
    Os = [jnp.asarray(O, jnp.float32) for O in Os]
    Gs = [jnp.asarray(G, jnp.float32) for G in Gs]

    if rank_p != rank:
        pr = rank_p - rank
        Is = [jnp.pad(I, ((0, 0), (0, pr), (0, 0))) for I in Is]
        Os = [jnp.pad(O, ((0, 0), (0, pr))) for O in Os]
        padded = []
        for i, G in enumerate(Gs):
            # column index of G decomposes with radix `rank`; pad every axis so
            # it matches the rank_p-radix kron built inside the kernel.
            Gt = G.reshape((rank,) * (i + 2))
            Gt = jnp.pad(Gt, [(0, pr)] * (i + 2))
            padded.append(Gt.reshape(rank_p, rank_p ** (i + 1)))
        Gs = padded

    i_all = jnp.concatenate(
        [Is[i].reshape((i + 1) * rank_p, in_features) for i in range(order)],
        axis=0).astype(compute_dtype)                           # (R_tot, F)
    o_all = jnp.concatenate(Os, axis=1)                         # (out, order*rank_p) f32
    const2d = jnp.asarray(const, jnp.float32)[:, None]          # (out, 1)
    return {"i_all": i_all, "o_all": o_all, "gs": Gs, "const": const2d}


# ----------------------------------------------------------------------------
# Forward implementation (jitted together with pad/transpose/cast of x)
# ----------------------------------------------------------------------------
def _forward(x, packed, *, x0, out_dtype, batch_tile, single_buffer_weights):
    squeeze = (x.ndim == 1)
    if squeeze:                                   # PyTorch flag_reshape path
        x = x[None, :]

    i_all, o_all = packed["i_all"], packed["o_all"]
    gs, const2d = packed["gs"], packed["const"]
    order = len(gs)
    rank = gs[0].shape[0]
    out_features = o_all.shape[0]
    r_total, in_features = i_all.shape
    compute_dtype = i_all.dtype

    if x.shape[1] != in_features:
        raise ValueError("in_features mismatch")
    batch = x.shape[0]
    x = jnp.asarray(x, jnp.float32) - x0                        # X = X - X0

    # ---- hardware-aware tiling + VMEM budget --------------------------------
    try:
        vmem_cap = int(pltpu.get_tpu_info().vmem_capacity_bytes)
    except Exception:
        vmem_cap = 64 * 2 ** 20                                 # v7x-conservative
    if batch_tile is None:
        batch_tile = 1024 if vmem_cap >= 100 * 2 ** 20 else 512
    batch_tile = max(128, (batch_tile // 128) * 128)

    bpad = _round_up(batch, 128)
    tb = min(batch_tile, bpad)
    if bpad >= 256 and bpad // tb < 2:   # >= 2 grid steps -> both v7x TCs busy
        tb = max(128, ((bpad // 2) // 128) * 128)
    bpad = _round_up(bpad, tb)
    grid = (bpad // tb,)

    # pad + transpose + cast stay inside the same jit as the pallas_call so XLA
    # fuses them with the kernel launch (no standalone HBM transpose pass).
    xt = jnp.pad(x, ((0, bpad - batch), (0, 0))).T.astype(compute_dtype)   # (F, Bpad)

    # ---- BlockSpecs ----------------------------------------------------------
    def _wspec(shape):                  # constant-index (resident) weights
        nd = len(shape)
        imap = lambda b, _nd=nd: (0,) * _nd
        if single_buffer_weights:
            return pl.BlockSpec(shape, imap, pipeline_mode=pl.Buffered(1))
        return pl.BlockSpec(shape, imap)

    in_specs = [
        pl.BlockSpec((in_features, tb), lambda b: (0, b)),      # xt (batch tiled)
        _wspec((out_features, 1)),                              # const
        _wspec((r_total, in_features)),                         # I_all
        _wspec((out_features, order * rank)),                   # O_all (f32)
    ] + [_wspec((rank, rank ** (i + 1))) for i in range(order)]             # G_i (f32)

    scratch_shapes = [pltpu.VMEM((r_total, tb), jnp.float32),               # z
                      pltpu.VMEM((order * rank, tb), jnp.float32)]          # t
    if order >= 2:
        scratch_shapes.append(pltpu.VMEM((rank ** order, tb), jnp.float32)) # kron

    # ---- VMEM accounting (tight; v7x safe) -----------------------------------
    itemsize = jnp.dtype(compute_dtype).itemsize
    out_itemsize = jnp.dtype(out_dtype).itemsize
    g_elems = sum(rank * rank ** (i + 1) for i in range(order))
    wbuf = 1 if single_buffer_weights else 2
    weight_bytes = (r_total * in_features * itemsize
                    + out_features * order * rank * 4
                    + g_elems * 4 + out_features * 4)
    stream_bytes = 2 * (in_features * tb * itemsize + out_features * tb * out_itemsize)
    scratch_bytes = (r_total + order * rank
                     + (rank ** order if order >= 2 else 0)) * tb * 4
    vmem_est = wbuf * weight_bytes + stream_bytes + scratch_bytes
    vmem_limit = int(min(int(0.87 * vmem_cap),
                         max(32 * 2 ** 20, int(1.3 * vmem_est) + (2 << 20))))

    # ---- cost estimate (hint for XLA scheduling) -----------------------------
    kron_mults = sum(rank ** (j + 1) for i in range(order) for j in range(1, i + 1))
    flops = bpad * (2 * r_total * in_features
                    + sum(2 * rank * rank ** (i + 1) for i in range(order))
                    + 2 * out_features * order * rank + kron_mults)
    bytes_accessed = (in_features * bpad * itemsize + weight_bytes
                      + out_features * bpad * out_itemsize)
    cost = pl.CostEstimate(flops=int(flops), transcendentals=0,
                           bytes_accessed=int(bytes_accessed))

    # bound the per-chunk kron live set to <= ~32 vregs
    live_rows_cap = max(8, rank, (128 * 1024) // (4 * tb))

    yt = pl.pallas_call(
        _make_kernel(order, rank, live_rows_cap),
        out_shape=jax.ShapeDtypeStruct((out_features, bpad), out_dtype),
        grid=grid,
        in_specs=in_specs,
        out_specs=pl.BlockSpec((out_features, tb), lambda b: (0, b)),
        scratch_shapes=scratch_shapes,
        compiler_params=pltpu.CompilerParams(
            dimension_semantics=("parallel",),     # batch tiles -> both TCs on v7x
            vmem_limit_bytes=vmem_limit),
        cost_estimate=cost,
    )(xt, const2d, i_all, o_all, *gs)

    y = yt[:, :batch].T                 # slice padded columns BEFORE transposing
    return y.reshape(-1) if squeeze else y


def make_fast_tucker_taylor(const, Is, Os, Gs, x0=0.0, *,
                            compute_dtype=jnp.bfloat16,
                            out_dtype=jnp.float32,
                            batch_tile=None):
    """Pre-pack the weights once and return a jitted forward(x) callable."""
    packed = pack_params(const, Is, Os, Gs, compute_dtype=compute_dtype)

    def _fwd(x, packed, single_buffer):
        return _forward(x, packed, x0=x0, out_dtype=out_dtype,
                        batch_tile=batch_tile, single_buffer_weights=single_buffer)

    fwd_single = jax.jit(functools.partial(_fwd, single_buffer=True))
    fwd_double = jax.jit(functools.partial(_fwd, single_buffer=False))
    state = {"single_ok": True}

    def forward(x):
        if state["single_ok"]:
            try:
                return fwd_single(x, packed)
            except Exception:
                # graceful fallback if this backend rejects pl.Buffered(1)
                state["single_ok"] = False
        return fwd_double(x, packed)

    return forward


def fast_tucker_taylor_forward(x, const, Is, Os, Gs, x0=0.0, **kwargs):
    """One-shot convenience wrapper (packs the weights every call; prefer
    make_fast_tucker_taylor for repeated use)."""
    return make_fast_tucker_taylor(const, Is, Os, Gs, x0, **kwargs)(x)


# ----------------------------------------------------------------------------
# Deterministic parameter init (shapes from Fast_Tucker_Taylor.__init__;
# Taylor-style scales, but all O factors nonzero so every order contributes).
# ----------------------------------------------------------------------------
def init_params(key, in_features, out_features, rank, order):
    keys = jax.random.split(key, 1 + 3 * order)
    const = 0.01 * jax.random.normal(keys[0], (out_features,), jnp.float32)
    Is, Os, Gs = [], [], []
    for i in range(order):
        k_i, k_o, k_g = keys[1 + 3 * i], keys[2 + 3 * i], keys[3 + 3 * i]
        base = 1.0
        for t in range(i + 1):
            base = base / (rank + 2 * t)
        i_std = base ** (1.0 / (2 ** (i + 1)))
        Is.append(i_std * jax.random.normal(k_i, (i + 1, rank, in_features), jnp.float32))
        Os.append((1.0 / rank) ** 0.5 *
                  jax.random.normal(k_o, (out_features, rank), jnp.float32))
        Gs.append((1.0 / (rank ** (i + 1))) ** 0.5 *
                  jax.random.normal(k_g, (rank, rank ** (i + 1)), jnp.float32))
    return const, Is, Os, Gs


# ----------------------------------------------------------------------------
# Pure-JAX reference (literal transcription of the PyTorch forward)
# ----------------------------------------------------------------------------
def reference_forward(x, const, Is, Os, Gs, x0=0.0):
    hp = jax.lax.Precision.HIGHEST
    X = jnp.asarray(x, jnp.float32) - x0
    B = X.shape[0]
    rank = Is[0].shape[1]
    Y = jnp.zeros((B, const.shape[0]), jnp.float32) + const
    for i in range(len(Os)):
        I, O, G = Is[i], Os[i], Gs[i]
        Z = jnp.einsum('jrf,bf->jrb', I, X, precision=hp)          # I @ X.T
        if i != 0:
            kron = Z[0]
            for j in range(1, i + 1):
                X3 = Z[j].reshape((rank,) + (1,) * j + (B,))
                kron = kron[None, ...] * X3
        else:
            kron = Z
        kron = kron.reshape(-1, B)
        Y = Y + jnp.dot(O, jnp.dot(G, kron, precision=hp), precision=hp).T
    return Y


if __name__ == "__main__":
    root = jax.random.PRNGKey(0)

    def check(name, got, want, rtol, atol):
        got32 = jnp.asarray(got, jnp.float32)
        if got32.shape != want.shape:
            raise AssertionError(f"{name}: shape {got32.shape} != {want.shape}")
        if not jnp.allclose(got32, want, rtol=rtol, atol=atol):
            err = float(jnp.max(jnp.abs(got32 - want)))
            raise AssertionError(f"{name}: max abs err {err}")

    # --- case 0: baseline (order=2, rank=16, single batch tile) --------------
    kx, kp = jax.random.split(jax.random.fold_in(root, 0))
    x0s = jax.random.normal(kx, (8, 32), jnp.float32)
    const0, Is0, Os0, Gs0 = init_params(kp, 32, 32, 16, 2)
    ref0 = reference_forward(x0s, const0, Is0, Os0, Gs0)

    fwd0_f32 = make_fast_tucker_taylor(const0, Is0, Os0, Gs0,
                                       compute_dtype=jnp.float32)
    check("case0 f32", jax.block_until_ready(fwd0_f32(x0s)), ref0, 5e-3, 5e-3)

    # bf16 MXU operands + bf16 output (fast path; G/O contraction stays f32)
    fwd0_bf16 = make_fast_tucker_taylor(const0, Is0, Os0, Gs0,
                                        compute_dtype=jnp.bfloat16,
                                        out_dtype=jnp.bfloat16)
    check("case0 bf16", jax.block_until_ready(fwd0_bf16(x0s)), ref0, 5e-2, 5e-2)

    # 1-D input path (flag_reshape in the PyTorch module)
    check("case0 1-D", jax.block_until_ready(fwd0_f32(x0s[0])), ref0[0], 5e-3, 5e-3)

    # --- case 1: multi-tile grid + rank not a multiple of 8 (12 -> 16) -------
    kx, kp = jax.random.split(jax.random.fold_in(root, 1))
    x1 = jax.random.normal(kx, (300, 24), jnp.float32)
    const1, Is1, Os1, Gs1 = init_params(kp, 24, 40, 12, 2)
    ref1 = reference_forward(x1, const1, Is1, Os1, Gs1)
    fwd1 = make_fast_tucker_taylor(const1, Is1, Os1, Gs1, compute_dtype=jnp.float32)
    check("case1 f32 multi-tile", jax.block_until_ready(fwd1(x1)), ref1, 5e-3, 5e-3)

    # --- case 2: order=3 (in-place kron level expansion in VMEM scratch) -----
    kx, kp = jax.random.split(jax.random.fold_in(root, 2))
    x2 = jax.random.normal(kx, (8, 16), jnp.float32)
    const2, Is2, Os2, Gs2 = init_params(kp, 16, 24, 8, 3)
    ref2 = reference_forward(x2, const2, Is2, Os2, Gs2)
    fwd2 = make_fast_tucker_taylor(const2, Is2, Os2, Gs2, compute_dtype=jnp.float32)
    check("case2 f32 order-3", jax.block_until_ready(fwd2(x2)), ref2, 5e-3, 5e-3)

    print("KERNEL_OK")
</pallas_src>

<mosaic_0001>
module attributes {stable_mosaic.version = 11 : i64} {
  func.func @kernel(%arg0: i32, %arg1: memref<32x128xf32, #tpu.memory_space<vmem>>, %arg2: memref<32x1xf32, #tpu.memory_space<vmem>>, %arg3: memref<48x32xf32, #tpu.memory_space<vmem>>, %arg4: memref<32x32xf32, #tpu.memory_space<vmem>>, %arg5: memref<16x16xf32, #tpu.memory_space<vmem>>, %arg6: memref<16x256xf32, #tpu.memory_space<vmem>>, %arg7: memref<32x128xf32, #tpu.memory_space<vmem>>, %arg8: memref<48x128xf32, #tpu.memory_space<vmem>>, %arg9: memref<32x128xf32, #tpu.memory_space<vmem>>, %arg10: memref<256x128xf32, #tpu.memory_space<vmem>>) attributes {dimension_semantics = [#tpu.dimension_semantics<parallel>], iteration_bounds = array<i64: 1>, scalar_prefetch = 0 : i64, scratch_operands = 3 : i64, tpu.core_type = #tpu.core_type<tc>, window_params = [{transform_indices = @transform_0, window_bounds = array<i64: 32, 128>}, {pipeline_mode = #tpu.pipeline_mode<synchronous>, transform_indices = @transform_1, window_bounds = array<i64: 32, 1>}, {pipeline_mode = #tpu.pipeline_mode<synchronous>, transform_indices = @transform_2, window_bounds = array<i64: 48, 32>}, {pipeline_mode = #tpu.pipeline_mode<synchronous>, transform_indices = @transform_3, window_bounds = array<i64: 32, 32>}, {pipeline_mode = #tpu.pipeline_mode<synchronous>, transform_indices = @transform_4, window_bounds = array<i64: 16, 16>}, {pipeline_mode = #tpu.pipeline_mode<synchronous>, transform_indices = @transform_5, window_bounds = array<i64: 16, 256>}, {transform_indices = @transform_6, window_bounds = array<i64: 32, 128>}]} {
    %c0 = arith.constant 0 : index
    %c0_0 = arith.constant 0 : index
    %0 = vector.load %arg3[%c0, %c0_0] : memref<48x32xf32, #tpu.memory_space<vmem>>, vector<48x32xf32>
    %c0_1 = arith.constant 0 : index
    %c0_2 = arith.constant 0 : index
    %1 = vector.load %arg1[%c0_1, %c0_2] : memref<32x128xf32, #tpu.memory_space<vmem>>, vector<32x128xf32>
    %cst = arith.constant dense<0.000000e+00> : vector<48x128xf32>
    %2 = tpu.matmul %0, %1, %cst {dimension_numbers = #tpu.dot_dimension_numbers<[1], [0], [0], [1], [0, 0, 1, 1], [], []>} : vector<48x32xf32>, vector<32x128xf32>, vector<48x128xf32> -> vector<48x128xf32>
    %c0_3 = arith.constant 0 : index
    %c0_4 = arith.constant 0 : index
    %3 = vector.load %arg8[%c0_3, %c0_4] : memref<48x128xf32, #tpu.memory_space<vmem>>, vector<48x128xf32>
    tpu.vector_store %arg8[%c0_3, %c0_4], %2 {strides = array<i32>} : memref<48x128xf32, #tpu.memory_space<vmem>>, vector<48x128xf32>,
    %c0_5 = arith.constant 0 : index
    %c0_6 = arith.constant 0 : index
    %4 = vector.load %arg5[%c0_5, %c0_6] : memref<16x16xf32, #tpu.memory_space<vmem>>, vector<16x16xf32>
    %c0_7 = arith.constant 0 : index
    %c0_8 = arith.constant 0 : index
    %5 = vector.load %arg8[%c0_7, %c0_8] : memref<48x128xf32, #tpu.memory_space<vmem>>, vector<16x128xf32>
    %cst_9 = arith.constant dense<0.000000e+00> : vector<16x128xf32>
    %6 = tpu.matmul %4, %5, %cst_9 {dimension_numbers = #tpu.dot_dimension_numbers<[1], [0], [0], [1], [0, 0, 1, 1], [], []>} : vector<16x16xf32>, vector<16x128xf32>, vector<16x128xf32> -> vector<16x128xf32>
    %c0_10 = arith.constant 0 : index
    %c0_11 = arith.constant 0 : index
    %7 = vector.load %arg9[%c0_10, %c0_11] : memref<32x128xf32, #tpu.memory_space<vmem>>, vector<16x128xf32>
    tpu.vector_store %arg9[%c0_10, %c0_11], %6 {strides = array<i32>} : memref<32x128xf32, #tpu.memory_space<vmem>>, vector<16x128xf32>,
    %c16 = arith.constant 16 : index
    %c0_12 = arith.constant 0 : index
    %8 = vector.load %arg8[%c16, %c0_12] : memref<48x128xf32, #tpu.memory_space<vmem>>, vector<16x128xf32>
    %c32 = arith.constant 32 : index
    %c0_13 = arith.constant 0 : index
    %9 = vector.load %arg8[%c32, %c0_13] : memref<48x128xf32, #tpu.memory_space<vmem>>, vector<16x128xf32>
    %10 = vector.extract_strided_slice %9 {offsets = [0, 0], sizes = [1, 128], strides = [1, 1]} : vector<16x128xf32> to vector<1x128xf32>
    %11 = vector.broadcast %10 : vector<1x128xf32> to vector<16x128xf32>
    %12 = arith.mulf %11, %8 : vector<16x128xf32>
    %c0_14 = arith.constant 0 : index
    %c0_15 = arith.constant 0 : index
    %13 = vector.load %arg10[%c0_14, %c0_15] : memref<256x128xf32, #tpu.memory_space<vmem>>, vector<16x128xf32>
    tpu.vector_store %arg10[%c0_14, %c0_15], %12 {strides = array<i32>} : memref<256x128xf32, #tpu.memory_space<vmem>>, vector<16x128xf32>,
    %14 = vector.extract_strided_slice %9 {offsets = [1, 0], sizes = [1, 128], strides = [1, 1]} : vector<16x128xf32> to vector<1x128xf32>
    %15 = vector.broadcast %14 : vector<1x128xf32> to vector<16x128xf32>
    %16 = arith.mulf %15, %8 : vector<16x128xf32>
    %c16_16 = arith.constant 16 : index
    %c0_17 = arith.constant 0 : index
    %17 = vector.load %arg10[%c16_16, %c0_17] : memref<256x128xf32, #tpu.memory_space<vmem>>, vector<16x128xf32>
    tpu.vector_store %arg10[%c16_16, %c0_17], %16 {strides = array<i32>} : memref<256x128xf32, #tpu.memory_space<vmem>>, vector<16x128xf32>,
    %18 = vector.extract_strided_slice %9 {offsets = [2, 0], sizes = [1, 128], strides = [1, 1]} : vector<16x128xf32> to vector<1x128xf32>
    %19 = vector.broadcast %18 : vector<1x128xf32> to vector<16x128xf32>
    %20 = arith.mulf %19, %8 : vector<16x128xf32>
    %c32_18 = arith.constant 32 : index
    %c0_19 = arith.constant 0 : index
    %21 = vector.load %arg10[%c32_18, %c0_19] : memref<256x128xf32, #tpu.memory_space<vmem>>, vector<16x128xf32>
    tpu.vector_store %arg10[%c32_18, %c0_19], %20 {strides = array<i32>} : memref<256x128xf32, #tpu.memory_space<vmem>>, vector<16x128xf32>,
    %22 = vector.extract_strided_slice %9 {offsets = [3, 0], sizes = [1, 128], strides = [1, 1]} : vector<16x128xf32> to vector<1x128xf32>
    %23 = vector.broadcast %22 : vector<1x128xf32> to vector<16x128xf32>
    %24 = arith.mulf %23, %8 : vector<16x128xf32>
    %c48 = arith.constant 48 : index
    %c0_20 = arith.constant 0 : index
    %25 = vector.load %arg10[%c48, %c0_20] : memref<256x128xf32, #tpu.memory_space<vmem>>, vector<16x128xf32>
    tpu.vector_store %arg10[%c48, %c0_20], %24 {strides = array<i32>} : memref<256x128xf32, #tpu.memory_space<vmem>>, vector<16x128xf32>,
    %26 = vector.extract_strided_slice %9 {offsets = [4, 0], sizes = [1, 128], strides = [1, 1]} : vector<16x128xf32> to vector<1x128xf32>
    %27 = vector.broadcast %26 : vector<1x128xf32> to vector<16x128xf32>
    %28 = arith.mulf %27, %8 : vector<16x128xf32>
    %c64 = arith.constant 64 : index
    %c0_21 = arith.constant 0 : index
    %29 = vector.load %arg10[%c64, %c0_21] : memref<256x128xf32, #tpu.memory_space<vmem>>, vector<16x128xf32>
    tpu.vector_store %arg10[%c64, %c0_21], %28 {strides = array<i32>} : memref<256x128xf32, #tpu.memory_space<vmem>>, vector<16x128xf32>,
    %30 = vector.extract_strided_slice %9 {offsets = [5, 0], sizes = [1, 128], strides = [1, 1]} : vector<16x128xf32> to vector<1x128xf32>
    %31 = vector.broadcast %30 : vector<1x128xf32> to vector<16x128xf32>
    %32 = arith.mulf %31, %8 : vector<16x128xf32>
    %c80 = arith.constant 80 : index
    %c0_22 = arith.constant 0 : index
    %33 = vector.load %arg10[%c80, %c0_22] : memref<256x128xf32, #tpu.memory_space<vmem>>, vector<16x128xf32>
    tpu.vector_store %arg10[%c80, %c0_22], %32 {strides = array<i32>} : memref<256x128xf32, #tpu.memory_space<vmem>>, vector<16x128xf32>,
    %34 = vector.extract_strided_slice %9 {offsets = [6, 0], sizes = [1, 128], strides = [1, 1]} : vector<16x128xf32> to vector<1x128xf32>
    %35 = vector.broadcast %34 : vector<1x128xf32> to vector<16x128xf32>
    %36 = arith.mulf %35, %8 : vector<16x128xf32>
    %c96 = arith.constant 96 : index
    %c0_23 = arith.constant 0 : index
    %37 = vector.load %arg10[%c96, %c0_23] : memref<256x128xf32, #tpu.memory_space<vmem>>, vector<16x128xf32>
    tpu.vector_store %arg10[%c96, %c0_23], %36 {strides = array<i32>} : memref<256x128xf32, #tpu.memory_space<vmem>>, vector<16x128xf32>,
    %38 = vector.extract_strided_slice %9 {offsets = [7, 0], sizes = [1, 128], strides = [1, 1]} : vector<16x128xf32> to vector<1x128xf32>
    %39 = vector.broadcast %38 : vector<1x128xf32> to vector<16x128xf32>
    %40 = arith.mulf %39, %8 : vector<16x128xf32>
    %c112 = arith.constant 112 : index
    %c0_24 = arith.constant 0 : index
    %41 = vector.load %arg10[%c112, %c0_24] : memref<256x128xf32, #tpu.memory_space<vmem>>, vector<16x128xf32>
    tpu.vector_store %arg10[%c112, %c0_24], %40 {strides = array<i32>} : memref<256x128xf32, #tpu.memory_space<vmem>>, vector<16x128xf32>,
    %42 = vector.extract_strided_slice %9 {offsets = [8, 0], sizes = [1, 128], strides = [1, 1]} : vector<16x128xf32> to vector<1x128xf32>
    %43 = vector.broadcast %42 : vector<1x128xf32> to vector<16x128xf32>
    %44 = arith.mulf %43, %8 : vector<16x128xf32>
    %c128 = arith.constant 128 : index
    %c0_25 = arith.constant 0 : index
    %45 = vector.load %arg10[%c128, %c0_25] : memref<256x128xf32, #tpu.memory_space<vmem>>, vector<16x128xf32>
    tpu.vector_store %arg10[%c128, %c0_25], %44 {strides = array<i32>} : memref<256x128xf32, #tpu.memory_space<vmem>>, vector<16x128xf32>,
    %46 = vector.extract_strided_slice %9 {offsets = [9, 0], sizes = [1, 128], strides = [1, 1]} : vector<16x128xf32> to vector<1x128xf32>
    %47 = vector.broadcast %46 : vector<1x128xf32> to vector<16x128xf32>
    %48 = arith.mulf %47, %8 : vector<16x128xf32>
    %c144 = arith.constant 144 : index
    %c0_26 = arith.constant 0 : index
    %49 = vector.load %arg10[%c144, %c0_26] : memref<256x128xf32, #tpu.memory_space<vmem>>, vector<16x128xf32>
    tpu.vector_store %arg10[%c144, %c0_26], %48 {strides = array<i32>} : memref<256x128xf32, #tpu.memory_space<vmem>>, vector<16x128xf32>,
    %50 = vector.extract_strided_slice %9 {offsets = [10, 0], sizes = [1, 128], strides = [1, 1]} : vector<16x128xf32> to vector<1x128xf32>
    %51 = vector.broadcast %50 : vector<1x128xf32> to vector<16x128xf32>
    %52 = arith.mulf %51, %8 : vector<16x128xf32>
    %c160 = arith.constant 160 : index
    %c0_27 = arith.constant 0 : index
    %53 = vector.load %arg10[%c160, %c0_27] : memref<256x128xf32, #tpu.memory_space<vmem>>, vector<16x128xf32>
    tpu.vector_store %arg10[%c160, %c0_27], %52 {strides = array<i32>} : memref<256x128xf32, #tpu.memory_space<vmem>>, vector<16x128xf32>,
    %54 = vector.extract_strided_slice %9 {offsets = [11, 0], sizes = [1, 128], strides = [1, 1]} : vector<16x128xf32> to vector<1x128xf32>
    %55 = vector.broadcast %54 : vector<1x128xf32> to vector<16x128xf32>
    %56 = arith.mulf %55, %8 : vector<16x128xf32>
    %c176 = arith.constant 176 : index
    %c0_28 = arith.constant 0 : index
    %57 = vector.load %arg10[%c176, %c0_28] : memref<256x128xf32, #tpu.memory_space<vmem>>, vector<16x128xf32>
    tpu.vector_store %arg10[%c176, %c0_28], %56 {strides = array<i32>} : memref<256x128xf32, #tpu.memory_space<vmem>>, vector<16x128xf32>,
    %58 = vector.extract_strided_slice %9 {offsets = [12, 0], sizes = [1, 128], strides = [1, 1]} : vector<16x128xf32> to vector<1x128xf32>
    %59 = vector.broadcast %58 : vector<1x128xf32> to vector<16x128xf32>
    %60 = arith.mulf %59, %8 : vector<16x128xf32>
    %c192 = arith.constant 192 : index
    %c0_29 = arith.constant 0 : index
    %61 = vector.load %arg10[%c192, %c0_29] : memref<256x128xf32, #tpu.memory_space<vmem>>, vector<16x128xf32>
    tpu.vector_store %arg10[%c192, %c0_29], %60 {strides = array<i32>} : memref<256x128xf32, #tpu.memory_space<vmem>>, vector<16x128xf32>,
    %62 = vector.extract_strided_slice %9 {offsets = [13, 0], sizes = [1, 128], strides = [1, 1]} : vector<16x128xf32> to vector<1x128xf32>
    %63 = vector.broadcast %62 : vector<1x128xf32> to vector<16x128xf32>
    %64 = arith.mulf %63, %8 : vector<16x128xf32>
    %c208 = arith.constant 208 : index
    %c0_30 = arith.constant 0 : index
    %65 = vector.load %arg10[%c208, %c0_30] : memref<256x128xf32, #tpu.memory_space<vmem>>, vector<16x128xf32>
    tpu.vector_store %arg10[%c208, %c0_30], %64 {strides = array<i32>} : memref<256x128xf32, #tpu.memory_space<vmem>>, vector<16x128xf32>,
    %66 = vector.extract_strided_slice %9 {offsets = [14, 0], sizes = [1, 128], strides = [1, 1]} : vector<16x128xf32> to vector<1x128xf32>
    %67 = vector.broadcast %66 : vector<1x128xf32> to vector<16x128xf32>
    %68 = arith.mulf %67, %8 : vector<16x128xf32>
    %c224 = arith.constant 224 : index
    %c0_31 = arith.constant 0 : index
    %69 = vector.load %arg10[%c224, %c0_31] : memref<256x128xf32, #tpu.memory_space<vmem>>, vector<16x128xf32>
    tpu.vector_store %arg10[%c224, %c0_31], %68 {strides = array<i32>} : memref<256x128xf32, #tpu.memory_space<vmem>>, vector<16x128xf32>,
    %70 = vector.extract_strided_slice %9 {offsets = [15, 0], sizes = [1, 128], strides = [1, 1]} : vector<16x128xf32> to vector<1x128xf32>
    %71 = vector.broadcast %70 : vector<1x128xf32> to vector<16x128xf32>
    %72 = arith.mulf %71, %8 : vector<16x128xf32>
    %c240 = arith.constant 240 : index
    %c0_32 = arith.constant 0 : index
    %73 = vector.load %arg10[%c240, %c0_32] : memref<256x128xf32, #tpu.memory_space<vmem>>, vector<16x128xf32>
    tpu.vector_store %arg10[%c240, %c0_32], %72 {strides = array<i32>} : memref<256x128xf32, #tpu.memory_space<vmem>>, vector<16x128xf32>,
    %c0_33 = arith.constant 0 : index
    %c0_34 = arith.constant 0 : index
    %74 = vector.load %arg6[%c0_33, %c0_34] : memref<16x256xf32, #tpu.memory_space<vmem>>, vector<16x256xf32>
    %c0_35 = arith.constant 0 : index
    %c0_36 = arith.constant 0 : index
    %75 = vector.load %arg10[%c0_35, %c0_36] : memref<256x128xf32, #tpu.memory_space<vmem>>, vector<256x128xf32>
    %cst_37 = arith.constant dense<0.000000e+00> : vector<16x128xf32>
    %76 = tpu.matmul %74, %75, %cst_37 {dimension_numbers = #tpu.dot_dimension_numbers<[1], [0], [0], [1], [0, 0, 1, 1], [], []>} : vector<16x256xf32>, vector<256x128xf32>, vector<16x128xf32> -> vector<16x128xf32>
    %c16_38 = arith.constant 16 : index
    %c0_39 = arith.constant 0 : index
    %77 = vector.load %arg9[%c16_38, %c0_39] : memref<32x128xf32, #tpu.memory_space<vmem>>, vector<16x128xf32>
    tpu.vector_store %arg9[%c16_38, %c0_39], %76 {strides = array<i32>} : memref<32x128xf32, #tpu.memory_space<vmem>>, vector<16x128xf32>,
    %c0_40 = arith.constant 0 : index
    %c0_41 = arith.constant 0 : index
    %78 = vector.load %arg4[%c0_40, %c0_41] : memref<32x32xf32, #tpu.memory_space<vmem>>, vector<32x32xf32>
    %c0_42 = arith.constant 0 : index
    %c0_43 = arith.constant 0 : index
    %79 = vector.load %arg9[%c0_42, %c0_43] : memref<32x128xf32, #tpu.memory_space<vmem>>, vector<32x128xf32>
    %cst_44 = arith.constant dense<0.000000e+00> : vector<32x128xf32>
    %80 = tpu.matmul %78, %79, %cst_44 {dimension_numbers = #tpu.dot_dimension_numbers<[1], [0], [0], [1], [0, 0, 1, 1], [], []>} : vector<32x32xf32>, vector<32x128xf32>, vector<32x128xf32> -> vector<32x128xf32>
    %c0_45 = arith.constant 0 : index
    %c0_46 = arith.constant 0 : index
    %81 = vector.load %arg2[%c0_45, %c0_46] : memref<32x1xf32, #tpu.memory_space<vmem>>, vector<32x1xf32>
    %82 = vector.broadcast %81 : vector<32x1xf32> to vector<32x128xf32>
    %83 = arith.addf %80, %82 : vector<32x128xf32>
    %c0_47 = arith.constant 0 : index
    %c0_48 = arith.constant 0 : index
    %84 = vector.load %arg7[%c0_47, %c0_48] : memref<32x128xf32, #tpu.memory_space<vmem>>, vector<32x128xf32>
    tpu.vector_store %arg7[%c0_47, %c0_48], %83 {strides = array<i32>} : memref<32x128xf32, #tpu.memory_space<vmem>>, vector<32x128xf32>,
    return
  }
  func.func @transform_0(%arg0: i32) -> (i32, i32) {
    %c0_i32 = arith.constant 0 : i32
    %c0_i32_0 = arith.constant 0 : i32
    return %c0_i32, %arg0 : i32, i32
  }
  func.func @transform_1(%arg0: i32) -> (i32, i32) {
    %c0_i32 = arith.constant 0 : i32
    %c0_i32_0 = arith.constant 0 : i32
    %c0_i32_1 = arith.constant 0 : i32
    return %c0_i32, %c0_i32_0 : i32, i32
  }
  func.func @transform_2(%arg0: i32) -> (i32, i32) {
    %c0_i32 = arith.constant 0 : i32
    %c0_i32_0 = arith.constant 0 : i32
    %c0_i32_1 = arith.constant 0 : i32
    return %c0_i32, %c0_i32_0 : i32, i32
  }
  func.func @transform_3(%arg0: i32) -> (i32, i32) {
    %c0_i32 = arith.constant 0 : i32
    %c0_i32_0 = arith.constant 0 : i32
    %c0_i32_1 = arith.constant 0 : i32
    return %c0_i32, %c0_i32_0 : i32, i32
  }
  func.func @transform_4(%arg0: i32) -> (i32, i32) {
    %c0_i32 = arith.constant 0 : i32
    %c0_i32_0 = arith.constant 0 : i32
    %c0_i32_1 = arith.constant 0 : i32
    return %c0_i32, %c0_i32_0 : i32, i32
  }
  func.func @transform_5(%arg0: i32) -> (i32, i32) {
    %c0_i32 = arith.constant 0 : i32
    %c0_i32_0 = arith.constant 0 : i32
    %c0_i32_1 = arith.constant 0 : i32
    return %c0_i32, %c0_i32_0 : i32, i32
  }
  func.func @transform_6(%arg0: i32) -> (i32, i32) {
    %c0_i32 = arith.constant 0 : i32
    %c0_i32_0 = arith.constant 0 : i32
    return %c0_i32, %arg0 : i32, i32
  }
}

module attributes {stable_mosaic.version = 11 : i64} {
  func.func @kernel(%arg0: i32, %arg1: memref<32x128xf32, #tpu.memory_space<vmem>>, %arg2: memref<32x1xf32, #tpu.memory_space<vmem>>, %arg3: memref<48x32xf32, #tpu.memory_space<vmem>>, %arg4: memref<32x32xf32, #tpu.memory_space<vmem>>, %arg5: memref<16x16xf32, #tpu.memory_space<vmem>>, %arg6: memref<16x256xf32, #tpu.memory_space<vmem>>, %arg7: memref<32x128xf32, #tpu.memory_space<vmem>>, %arg8: memref<48x128xf32, #tpu.memory_space<vmem>>, %arg9: memref<32x128xf32, #tpu.memory_space<vmem>>, %arg10: memref<256x128xf32, #tpu.memory_space<vmem>>) attributes {dimension_semantics = [#tpu.dimension_semantics<parallel>], iteration_bounds = array<i64: 1>, scalar_prefetch = 0 : i64, scratch_operands = 3 : i64, tpu.core_type = #tpu.core_type<tc>, window_params = [{transform_indices = @transform_0, window_bounds = array<i64: 32, 128>}, {pipeline_mode = #tpu.pipeline_mode<synchronous>, transform_indices = @transform_1, window_bounds = array<i64: 32, 1>}, {pipeline_mode = #tpu.pipeline_mode<synchronous>, transform_indices = @transform_2, window_bounds = array<i64: 48, 32>}, {pipeline_mode = #tpu.pipeline_mode<synchronous>, transform_indices = @transform_3, window_bounds = array<i64: 32, 32>}, {pipeline_mode = #tpu.pipeline_mode<synchronous>, transform_indices = @transform_4, window_bounds = array<i64: 16, 16>}, {pipeline_mode = #tpu.pipeline_mode<synchronous>, transform_indices = @transform_5, window_bounds = array<i64: 16, 256>}, {transform_indices = @transform_6, window_bounds = array<i64: 32, 128>}]} {
    %c0 = arith.constant 0 : index
    %c0_0 = arith.constant 0 : index
    %0 = vector.load %arg3[%c0, %c0_0] : memref<48x32xf32, #tpu.memory_space<vmem>>, vector<48x32xf32>
    %c0_1 = arith.constant 0 : index
    %c0_2 = arith.constant 0 : index
    %1 = vector.load %arg1[%c0_1, %c0_2] : memref<32x128xf32, #tpu.memory_space<vmem>>, vector<32x128xf32>
    %cst = arith.constant dense<0.000000e+00> : vector<48x128xf32>
    %2 = tpu.matmul %0, %1, %cst {dimension_numbers = #tpu.dot_dimension_numbers<[1], [0], [0], [1], [0, 0, 1, 1], [], []>} : vector<48x32xf32>, vector<32x128xf32>, vector<48x128xf32> -> vector<48x128xf32>
    %c0_3 = arith.constant 0 : index
    %c0_4 = arith.constant 0 : index
    %3 = vector.load %arg8[%c0_3, %c0_4] : memref<48x128xf32, #tpu.memory_space<vmem>>, vector<48x128xf32>
    tpu.vector_store %arg8[%c0_3, %c0_4], %2 {strides = array<i32>} : memref<48x128xf32, #tpu.memory_space<vmem>>, vector<48x128xf32>,
    %c0_5 = arith.constant 0 : index
    %c0_6 = arith.constant 0 : index
    %4 = vector.load %arg5[%c0_5, %c0_6] : memref<16x16xf32, #tpu.memory_space<vmem>>, vector<16x16xf32>
    %c0_7 = arith.constant 0 : index
    %c0_8 = arith.constant 0 : index
    %5 = vector.load %arg8[%c0_7, %c0_8] : memref<48x128xf32, #tpu.memory_space<vmem>>, vector<16x128xf32>
    %cst_9 = arith.constant dense<0.000000e+00> : vector<16x128xf32>
    %6 = tpu.matmul %4, %5, %cst_9 {dimension_numbers = #tpu.dot_dimension_numbers<[1], [0], [0], [1], [0, 0, 1, 1], [], []>} : vector<16x16xf32>, vector<16x128xf32>, vector<16x128xf32> -> vector<16x128xf32>
    %c0_10 = arith.constant 0 : index
    %c0_11 = arith.constant 0 : index
    %7 = vector.load %arg9[%c0_10, %c0_11] : memref<32x128xf32, #tpu.memory_space<vmem>>, vector<16x128xf32>
    tpu.vector_store %arg9[%c0_10, %c0_11], %6 {strides = array<i32>} : memref<32x128xf32, #tpu.memory_space<vmem>>, vector<16x128xf32>,
    %c16 = arith.constant 16 : index
    %c0_12 = arith.constant 0 : index
    %8 = vector.load %arg8[%c16, %c0_12] : memref<48x128xf32, #tpu.memory_space<vmem>>, vector<16x128xf32>
    %c32 = arith.constant 32 : index
    %c0_13 = arith.constant 0 : index
    %9 = vector.load %arg8[%c32, %c0_13] : memref<48x128xf32, #tpu.memory_space<vmem>>, vector<16x128xf32>
    %10 = vector.extract_strided_slice %9 {offsets = [0, 0], sizes = [1, 128], strides = [1, 1]} : vector<16x128xf32> to vector<1x128xf32>
    %11 = vector.broadcast %10 : vector<1x128xf32> to vector<16x128xf32>
    %12 = arith.mulf %11, %8 : vector<16x128xf32>
    %c0_14 = arith.constant 0 : index
    %c0_15 = arith.constant 0 : index
    %13 = vector.load %arg10[%c0_14, %c0_15] : memref<256x128xf32, #tpu.memory_space<vmem>>, vector<16x128xf32>
    tpu.vector_store %arg10[%c0_14, %c0_15], %12 {strides = array<i32>} : memref<256x128xf32, #tpu.memory_space<vmem>>, vector<16x128xf32>,
    %14 = vector.extract_strided_slice %9 {offsets = [1, 0], sizes = [1, 128], strides = [1, 1]} : vector<16x128xf32> to vector<1x128xf32>
    %15 = vector.broadcast %14 : vector<1x128xf32> to vector<16x128xf32>
    %16 = arith.mulf %15, %8 : vector<16x128xf32>
    %c16_16 = arith.constant 16 : index
    %c0_17 = arith.constant 0 : index
    %17 = vector.load %arg10[%c16_16, %c0_17] : memref<256x128xf32, #tpu.memory_space<vmem>>, vector<16x128xf32>
    tpu.vector_store %arg10[%c16_16, %c0_17], %16 {strides = array<i32>} : memref<256x128xf32, #tpu.memory_space<vmem>>, vector<16x128xf32>,
    %18 = vector.extract_strided_slice %9 {offsets = [2, 0], sizes = [1, 128], strides = [1, 1]} : vector<16x128xf32> to vector<1x128xf32>
    %19 = vector.broadcast %18 : vector<1x128xf32> to vector<16x128xf32>
    %20 = arith.mulf %19, %8 : vector<16x128xf32>
    %c32_18 = arith.constant 32 : index
    %c0_19 = arith.constant 0 : index
    %21 = vector.load %arg10[%c32_18, %c0_19] : memref<256x128xf32, #tpu.memory_space<vmem>>, vector<16x128xf32>
    tpu.vector_store %arg10[%c32_18, %c0_19], %20 {strides = array<i32>} : memref<256x128xf32, #tpu.memory_space<vmem>>, vector<16x128xf32>,
    %22 = vector.extract_strided_slice %9 {offsets = [3, 0], sizes = [1, 128], strides = [1, 1]} : vector<16x128xf32> to vector<1x128xf32>
    %23 = vector.broadcast %22 : vector<1x128xf32> to vector<16x128xf32>
    %24 = arith.mulf %23, %8 : vector<16x128xf32>
    %c48 = arith.constant 48 : index
    %c0_20 = arith.constant 0 : index
    %25 = vector.load %arg10[%c48, %c0_20] : memref<256x128xf32, #tpu.memory_space<vmem>>, vector<16x128xf32>
    tpu.vector_store %arg10[%c48, %c0_20], %24 {strides = array<i32>} : memref<256x128xf32, #tpu.memory_space<vmem>>, vector<16x128xf32>,
    %26 = vector.extract_strided_slice %9 {offsets = [4, 0], sizes = [1, 128], strides = [1, 1]} : vector<16x128xf32> to vector<1x128xf32>
    %27 = vector.broadcast %26 : vector<1x128xf32> to vector<16x128xf32>
    %28 = arith.mulf %27, %8 : vector<16x128xf32>
    %c64 = arith.constant 64 : index
    %c0_21 = arith.constant 0 : index
    %29 = vector.load %arg10[%c64, %c0_21] : memref<256x128xf32, #tpu.memory_space<vmem>>, vector<16x128xf32>
    tpu.vector_store %arg10[%c64, %c0_21], %28 {strides = array<i32>} : memref<256x128xf32, #tpu.memory_space<vmem>>, vector<16x128xf32>,
    %30 = vector.extract_strided_slice %9 {offsets = [5, 0], sizes = [1, 128], strides = [1, 1]} : vector<16x128xf32> to vector<1x128xf32>
    %31 = vector.broadcast %30 : vector<1x128xf32> to vector<16x128xf32>
    %32 = arith.mulf %31, %8 : vector<16x128xf32>
    %c80 = arith.constant 80 : index
    %c0_22 = arith.constant 0 : index
    %33 = vector.load %arg10[%c80, %c0_22] : memref<256x128xf32, #tpu.memory_space<vmem>>, vector<16x128xf32>
    tpu.vector_store %arg10[%c80, %c0_22], %32 {strides = array<i32>} : memref<256x128xf32, #tpu.memory_space<vmem>>, vector<16x128xf32>,
    %34 = vector.extract_strided_slice %9 {offsets = [6, 0], sizes = [1, 128], strides = [1, 1]} : vector<16x128xf32> to vector<1x128xf32>
    %35 = vector.broadcast %34 : vector<1x128xf32> to vector<16x128xf32>
    %36 = arith.mulf %35, %8 : vector<16x128xf32>
    %c96 = arith.constant 96 : index
    %c0_23 = arith.constant 0 : index
    %37 = vector.load %arg10[%c96, %c0_23] : memref<256x128xf32, #tpu.memory_space<vmem>>, vector<16x128xf32>
    tpu.vector_store %arg10[%c96, %c0_23], %36 {strides = array<i32>} : memref<256x128xf32, #tpu.memory_space<vmem>>, vector<16x128xf32>,
    %38 = vector.extract_strided_slice %9 {offsets = [7, 0], sizes = [1, 128], strides = [1, 1]} : vector<16x128xf32> to vector<1x128xf32>
    %39 = vector.broadcast %38 : vector<1x128xf32> to vector<16x128xf32>
    %40 = arith.mulf %39, %8 : vector<16x128xf32>
    %c112 = arith.constant 112 : index
    %c0_24 = arith.constant 0 : index
    %41 = vector.load %arg10[%c112, %c0_24] : memref<256x128xf32, #tpu.memory_space<vmem>>, vector<16x128xf32>
    tpu.vector_store %arg10[%c112, %c0_24], %40 {strides = array<i32>} : memref<256x128xf32, #tpu.memory_space<vmem>>, vector<16x128xf32>,
    %42 = vector.extract_strided_slice %9 {offsets = [8, 0], sizes = [1, 128], strides = [1, 1]} : vector<16x128xf32> to vector<1x128xf32>
    %43 = vector.broadcast %42 : vector<1x128xf32> to vector<16x128xf32>
    %44 = arith.mulf %43, %8 : vector<16x128xf32>
    %c128 = arith.constant 128 : index
    %c0_25 = arith.constant 0 : index
    %45 = vector.load %arg10[%c128, %c0_25] : memref<256x128xf32, #tpu.memory_space<vmem>>, vector<16x128xf32>
    tpu.vector_store %arg10[%c128, %c0_25], %44 {strides = array<i32>} : memref<256x128xf32, #tpu.memory_space<vmem>>, vector<16x128xf32>,
    %46 = vector.extract_strided_slice %9 {offsets = [9, 0], sizes = [1, 128], strides = [1, 1]} : vector<16x128xf32> to vector<1x128xf32>
    %47 = vector.broadcast %46 : vector<1x128xf32> to vector<16x128xf32>
    %48 = arith.mulf %47, %8 : vector<16x128xf32>
    %c144 = arith.constant 144 : index
    %c0_26 = arith.constant 0 : index
    %49 = vector.load %arg10[%c144, %c0_26] : memref<256x128xf32, #tpu.memory_space<vmem>>, vector<16x128xf32>
    tpu.vector_store %arg10[%c144, %c0_26], %48 {strides = array<i32>} : memref<256x128xf32, #tpu.memory_space<vmem>>, vector<16x128xf32>,
    %50 = vector.extract_strided_slice %9 {offsets = [10, 0], sizes = [1, 128], strides = [1, 1]} : vector<16x128xf32> to vector<1x128xf32>
    %51 = vector.broadcast %50 : vector<1x128xf32> to vector<16x128xf32>
    %52 = arith.mulf %51, %8 : vector<16x128xf32>
    %c160 = arith.constant 160 : index
    %c0_27 = arith.constant 0 : index
    %53 = vector.load %arg10[%c160, %c0_27] : memref<256x128xf32, #tpu.memory_space<vmem>>, vector<16x128xf32>
    tpu.vector_store %arg10[%c160, %c0_27], %52 {strides = array<i32>} : memref<256x128xf32, #tpu.memory_space<vmem>>, vector<16x128xf32>,
    %54 = vector.extract_strided_slice %9 {offsets = [11, 0], sizes = [1, 128], strides = [1, 1]} : vector<16x128xf32> to vector<1x128xf32>
    %55 = vector.broadcast %54 : vector<1x128xf32> to vector<16x128xf32>
    %56 = arith.mulf %55, %8 : vector<16x128xf32>
    %c176 = arith.constant 176 : index
    %c0_28 = arith.constant 0 : index
    %57 = vector.load %arg10[%c176, %c0_28] : memref<256x128xf32, #tpu.memory_space<vmem>>, vector<16x128xf32>
    tpu.vector_store %arg10[%c176, %c0_28], %56 {strides = array<i32>} : memref<256x128xf32, #tpu.memory_space<vmem>>, vector<16x128xf32>,
    %58 = vector.extract_strided_slice %9 {offsets = [12, 0], sizes = [1, 128], strides = [1, 1]} : vector<16x128xf32> to vector<1x128xf32>
    %59 = vector.broadcast %58 : vector<1x128xf32> to vector<16x128xf32>
    %60 = arith.mulf %59, %8 : vector<16x128xf32>
    %c192 = arith.constant 192 : index
    %c0_29 = arith.constant 0 : index
    %61 = vector.load %arg10[%c192, %c0_29] : memref<256x128xf32, #tpu.memory_space<vmem>>, vector<16x128xf32>
    tpu.vector_store %arg10[%c192, %c0_29], %60 {strides = array<i32>} : memref<256x128xf32, #tpu.memory_space<vmem>>, vector<16x128xf32>,
    %62 = vector.extract_strided_slice %9 {offsets = [13, 0], sizes = [1, 128], strides = [1, 1]} : vector<16x128xf32> to vector<1x128xf32>
    %63 = vector.broadcast %62 : vector<1x128xf32> to vector<16x128xf32>
    %64 = arith.mulf %63, %8 : vector<16x128xf32>
    %c208 = arith.constant 208 : index
    %c0_30 = arith.constant 0 : index
    %65 = vector.load %arg10[%c208, %c0_30] : memref<256x128xf32, #tpu.memory_space<vmem>>, vector<16x128xf32>
    tpu.vector_store %arg10[%c208, %c0_30], %64 {strides = array<i32>} : memref<256x128xf32, #tpu.memory_space<vmem>>, vector<16x128xf32>,
    %66 = vector.extract_strided_slice %9 {offsets = [14, 0], sizes = [1, 128], strides = [1, 1]} : vector<16x128xf32> to vector<1x128xf32>
    %67 = vector.broadcast %66 : vector<1x128xf32> to vector<16x128xf32>
    %68 = arith.mulf %67, %8 : vector<16x128xf32>
    %c224 = arith.constant 224 : index
    %c0_31 = arith.constant 0 : index
    %69 = vector.load %arg10[%c224, %c0_31] : memref<256x128xf32, #tpu.memory_space<vmem>>, vector<16x128xf32>
    tpu.vector_store %arg10[%c224, %c0_31], %68 {strides = array<i32>} : memref<256x128xf32, #tpu.memory_space<vmem>>, vector<16x128xf32>,
    %70 = vector.extract_strided_slice %9 {offsets = [15, 0], sizes = [1, 128], strides = [1, 1]} : vector<16x128xf32> to vector<1x128xf32>
    %71 = vector.broadcast %70 : vector<1x128xf32> to vector<16x128xf32>
    %72 = arith.mulf %71, %8 : vector<16x128xf32>
    %c240 = arith.constant 240 : index
    %c0_32 = arith.constant 0 : index
    %73 = vector.load %arg10[%c240, %c0_32] : memref<256x128xf32, #tpu.memory_space<vmem>>, vector<16x128xf32>
    tpu.vector_store %arg10[%c240, %c0_32], %72 {strides = array<i32>} : memref<256x128xf32, #tpu.memory_space<vmem>>, vector<16x128xf32>,
    %c0_33 = arith.constant 0 : index
    %c0_34 = arith.constant 0 : index
    %74 = vector.load %arg6[%c0_33, %c0_34] : memref<16x256xf32, #tpu.memory_space<vmem>>, vector<16x256xf32>
    %c0_35 = arith.constant 0 : index
    %c0_36 = arith.constant 0 : index
    %75 = vector.load %arg10[%c0_35, %c0_36] : memref<256x128xf32, #tpu.memory_space<vmem>>, vector<256x128xf32>
    %cst_37 = arith.constant dense<0.000000e+00> : vector<16x128xf32>
    %76 = tpu.matmul %74, %75, %cst_37 {dimension_numbers = #tpu.dot_dimension_numbers<[1], [0], [0], [1], [0, 0, 1, 1], [], []>} : vector<16x256xf32>, vector<256x128xf32>, vector<16x128xf32> -> vector<16x128xf32>
    %c16_38 = arith.constant 16 : index
    %c0_39 = arith.constant 0 : index
    %77 = vector.load %arg9[%c16_38, %c0_39] : memref<32x128xf32, #tpu.memory_space<vmem>>, vector<16x128xf32>
    tpu.vector_store %arg9[%c16_38, %c0_39], %76 {strides = array<i32>} : memref<32x128xf32, #tpu.memory_space<vmem>>, vector<16x128xf32>,
    %c0_40 = arith.constant 0 : index
    %c0_41 = arith.constant 0 : index
    %78 = vector.load %arg4[%c0_40, %c0_41] : memref<32x32xf32, #tpu.memory_space<vmem>>, vector<32x32xf32>
    %c0_42 = arith.constant 0 : index
    %c0_43 = arith.constant 0 : index
    %79 = vector.load %arg9[%c0_42, %c0_43] : memref<32x128xf32, #tpu.memory_space<vmem>>, vector<32x128xf32>
    %cst_44 = arith.constant dense<0.000000e+00> : vector<32x128xf32>
    %80 = tpu.matmul %78, %79, %cst_44 {dimension_numbers = #tpu.dot_dimension_numbers<[1], [0], [0], [1], [0, 0, 1, 1], [], []>} : vector<32x32xf32>, vector<32x128xf32>, vector<32x128xf32> -> vector<32x128xf32>
    %c0_45 = arith.constant 0 : index
    %c0_46 = arith.constant 0 : index
    %81 = vector.load %arg2[%c0_45, %c0_46] : memref<32x1xf32, #tpu.memory_space<vmem>>, vector<32x1xf32>
    %82 = vector.broadcast %81 : vector<32x1xf32> to vector<32x128xf32>
    %83 = arith.addf %80, %82 : vector<32x128xf32>
    %c0_47 = arith.constant 0 : index
    %c0_48 = arith.constant 0 : index
    %84 = vector.load %arg7[%c0_47, %c0_48] : memref<32x128xf32, #tpu.memory_space<vmem>>, vector<32x128xf32>
    tpu.vector_store %arg7[%c0_47, %c0_48], %83 {strides = array<i32>} : memref<32x128xf32, #tpu.memory_space<vmem>>, vector<32x128xf32>,
    return
  }
  func.func @transform_0(%arg0: i32) -> (i32, i32) {
    %c0_i32 = arith.constant 0 : i32
    %c0_i32_0 = arith.constant 0 : i32
    return %c0_i32, %arg0 : i32, i32
  }
  func.func @transform_1(%arg0: i32) -> (i32, i32) {
    %c0_i32 = arith.constant 0 : i32
    %c0_i32_0 = arith.constant 0 : i32
    %c0_i32_1 = arith.constant 0 : i32
    return %c0_i32, %c0_i32_0 : i32, i32
  }
  func.func @transform_2(%arg0: i32) -> (i32, i32) {
    %c0_i32 = arith.constant 0 : i32
    %c0_i32_0 = arith.constant 0 : i32
    %c0_i32_1 = arith.constant 0 : i32
    return %c0_i32, %c0_i32_0 : i32, i32
  }
  func.func @transform_3(%arg0: i32) -> (i32, i32) {
    %c0_i32 = arith.constant 0 : i32
    %c0_i32_0 = arith.constant 0 : i32
    %c0_i32_1 = arith.constant 0 : i32
    return %c0_i32, %c0_i32_0 : i32, i32
  }
  func.func @transform_4(%arg0: i32) -> (i32, i32) {
    %c0_i32 = arith.constant 0 : i32
    %c0_i32_0 = arith.constant 0 : i32
    %c0_i32_1 = arith.constant 0 : i32
    return %c0_i32, %c0_i32_0 : i32, i32
  }
  func.func @transform_5(%arg0: i32) -> (i32, i32) {
    %c0_i32 = arith.constant 0 : i32
    %c0_i32_0 = arith.constant 0 : i32
    %c0_i32_1 = arith.constant 0 : i32
    return %c0_i32, %c0_i32_0 : i32, i32
  }
  func.func @transform_6(%arg0: i32) -> (i32, i32) {
    %c0_i32 = arith.constant 0 : i32
    %c0_i32_0 = arith.constant 0 : i32
    return %c0_i32, %arg0 : i32, i32
  }
}

</mosaic_0001>

<llo_original>
// kernel: _fwd.1
$region0: #{_fwd.1}
  #allocation0 [shape = 'u32[]', space=smem, size = 0x4, offset = 0x4, fixed_abs, tag = 'smem constant byte address 0x4 - core index']
  #allocation1 [shape = 'u32[72,128]{1,0:T(1,128)}', space=vmem, size = 0x9000, scoped, tag = 'internal scratch']
  #allocation2 [shape = 'f32[48,128]{1,0:T(8,128)}', space=vmem, size = 0x6000, scoped, tag = 'scratch operand']
  #allocation3 [shape = 'f32[32,128]{1,0:T(8,128)}', space=vmem, size = 0x4000, scoped, tag = 'scratch operand']
  #allocation4 [shape = 'f32[256,128]{1,0:T(8,128)}', space=vmem, size = 0x20000, scoped, tag = 'scratch operand']
  %s0 = inlined_call_operand.vmem [shape: f32[32,128], index: 0, kind: input, shape index: {}]
  %s1 = inlined_call_operand.vmem [shape: f32[32,1], index: 1, kind: input, shape index: {}]
  %s2 = inlined_call_operand.vmem [shape: f32[48,32], index: 2, kind: input, shape index: {}]
  %s3 = inlined_call_operand.vmem [shape: f32[32,32], index: 3, kind: input, shape index: {}]
  %s4 = inlined_call_operand.vmem [shape: f32[16,16], index: 4, kind: input, shape index: {}]
  %s5 = inlined_call_operand.vmem [shape: f32[16,256], index: 5, kind: input, shape index: {}]
  %s6 = inlined_call_operand.vmem [shape: f32[32,128], index: 6, kind: output, shape index: {}]
  %s7 = sld [smem:[#allocation0]]
  $region34: #{_fwd.1} parent=0
    _
  %s9 = ssub.s32 1, %s7
  %s10 = scalar_select 0, %s9, %s7
  // Predicated region
  $region2: #{_fwd.1} parent=0 // pred_check
    _
  $region3: #{_fwd.1} parent=0 // pred_check_branch
    %12 = sbr.rel (0) target = $region5
  $region4: #{_fwd.1} parent=0 // pred_region
    _
  $region5: #{_fwd.1} parent=0 // pred_fallthru
    _
  // Predicated region
  $region6: #{_fwd.1} parent=0 // pred_check
    _
  $region7: #{_fwd.1} parent=0 // pred_check_branch
    %14 = sbr.rel (0) target = $region9
  $region8: #{_fwd.1} parent=0 // pred_region
    _
  $region9: #{_fwd.1} parent=0 // pred_fallthru
    _
  // Predicated region
  $region10: #{_fwd.1} parent=0 // pred_check
    _
  $region11: #{_fwd.1} parent=0 // pred_check_branch
    %16 = sbr.rel (0) target = $region13
  $region12: #{_fwd.1} parent=0 // pred_region
    _
  $region13: #{_fwd.1} parent=0 // pred_fallthru
    _
  // Predicated region
  $region14: #{_fwd.1} parent=0 // pred_check
    _
  $region15: #{_fwd.1} parent=0 // pred_check_branch
    %18 = sbr.rel (0) target = $region17
  $region16: #{_fwd.1} parent=0 // pred_region
    _
  $region17: #{_fwd.1} parent=0 // pred_fallthru
    _
  // Predicated region
  $region18: #{_fwd.1} parent=0 // pred_check
    _
  $region19: #{_fwd.1} parent=0 // pred_check_branch
    %20 = sbr.rel (0) target = $region21
  $region20: #{_fwd.1} parent=0 // pred_region
    _
  $region21: #{_fwd.1} parent=0 // pred_fallthru
    _
  // Predicated region
  $region22: #{_fwd.1} parent=0 // pred_check
    _
  $region23: #{_fwd.1} parent=0 // pred_check_branch
    %22 = sbr.rel (0) target = $region25
  $region24: #{_fwd.1} parent=0 // pred_region
    _
  $region25: #{_fwd.1} parent=0 // pred_fallthru
    _
  %v23 = vld [vmem:[%s2] sm:$0xff]
  %v24 = vld [vmem:[%s2 + $0x8] sm:$0xff]
  %v25 = vld [vmem:[%s2 + $0x10] sm:$0xff]
  %v26 = vld [vmem:[%s2 + $0x18] sm:$0xff]
  %v27 = vld [vmem:[%s2 + $0x20] sm:$0xff]
  %v28 = vld [vmem:[%s2 + $0x28] sm:$0xff]
  %v29 = vld [vmem:[%s0] sm:$0xff]
  %v30 = vld [vmem:[%s0 + $0x8] sm:$0xff]
  %v31 = vld [vmem:[%s0 + $0x10] sm:$0xff]
  %v32 = vld [vmem:[%s0 + $0x18] sm:$0xff]
  %vm33 = vcmask 261120
  %v35 = vsel %vm33, %v23, 0
  %v38 = vsel %vm33, %v24, 0
  %v41 = vsel %vm33, %v25, 0
  %v44 = vsel %vm33, %v26, 0
  %v47 = vsel %vm33, %v27, 0
  %v50 = vsel %vm33, %v28, 0
  %52 = vmatpush.msra.mxu0 0.0
  %53 = vmatpush.msra.mxu0 0.0
  %54 = vmatpush.msra.mxu0 0.0
  %55 = vmatpush.msra.mxu0 0.0
  %56 = vmatpush.msra.mxu0 0.0
  %57 = vmatpush.msra.mxu0 0.0
  %58 = vmatpush.msra.mxu0 0.0
  %59 = vmatpush.msra.mxu0 0.0
  %60 = vmatpush.msra.mxu0 0.0
  %61 = vmatpush.msra.mxu0 0.0
  %62 = vmatpush.msra.mxu0 0.0
  %63 = vmatpush.msra.mxu0 0.0
  %64 = vmatpush.msra.mxu0 %v32
  %65 = vmatpush.msra.mxu0 %v31
  %66 = vmatpush.msra.mxu0 %v30
  %67 = vmatpush.msra.mxu0 %v29
  %68 = vmatmul.f32.gmra.mxu0 %v35
  %v69 = vpop.f32.mrf.mxu0
  %v70 = vadd.f32 0.0, %v69
  %71 = vmatmul.f32.gmra.mxu0 %v38
  %v72 = vpop.f32.mrf.mxu0
  %v73 = vadd.f32 0.0, %v72
  %74 = vmatmul.f32.gmra.mxu0 %v41
  %v75 = vpop.f32.mrf.mxu0
  %v76 = vadd.f32 0.0, %v75
  %77 = vmatmul.f32.gmra.mxu0 %v44
  %v78 = vpop.f32.mrf.mxu0
  %v79 = vadd.f32 0.0, %v78
  %80 = vmatmul.f32.gmra.mxu0 %v47
  %v81 = vpop.f32.mrf.mxu0
  %v82 = vadd.f32 0.0, %v81
  %83 = vmatmul.f32.gmra.mxu0 %v50
  %v84 = vpop.f32.mrf.mxu0
  %v85 = vadd.f32 0.0, %v84
  %86 = vdwg.mxu0
  %87 = vst [vmem:[#allocation2] sm:$0xff] %v70
  %88 = vst [vmem:[#allocation2 + $0x8] sm:$0xff] %v73
  %89 = vst [vmem:[#allocation2 + $0x10] sm:$0xff] %v76
  %90 = vst [vmem:[#allocation2 + $0x18] sm:$0xff] %v79
  %91 = vst [vmem:[#allocation2 + $0x20] sm:$0xff] %v82
  %92 = vst [vmem:[#allocation2 + $0x28] sm:$0xff] %v85
  %v93 = vld [vmem:[%s4] sm:$0xff]
  %v94 = vld [vmem:[%s4 + $0x8] sm:$0xff]
  %v95 = vld [vmem:[#allocation2] sm:$0xff]
  %v96 = vld [vmem:[#allocation2 + $0x8] sm:$0xff]
  %vm97 = vcmask 130048
  %v99 = vsel %vm97, %v93, 0
  %v102 = vsel %vm97, %v94, 0
  %104 = vmatpush.msra.mxu0 0.0
  %105 = vmatpush.msra.mxu0 0.0
  %106 = vmatpush.msra.mxu0 0.0
  %107 = vmatpush.msra.mxu0 0.0
  %108 = vmatpush.msra.mxu0 0.0
  %109 = vmatpush.msra.mxu0 0.0
  %110 = vmatpush.msra.mxu0 0.0
  %111 = vmatpush.msra.mxu0 0.0
  %112 = vmatpush.msra.mxu0 0.0
  %113 = vmatpush.msra.mxu0 0.0
  %114 = vmatpush.msra.mxu0 0.0
  %115 = vmatpush.msra.mxu0 0.0
  %116 = vmatpush.msra.mxu0 0.0
  %117 = vmatpush.msra.mxu0 0.0
  %118 = vmatpush.msra.mxu0 %v96
  %119 = vmatpush.msra.mxu0 %v95
  %120 = vmatmul.f32.gmra.mxu0 %v99
  %v121 = vpop.f32.mrf.mxu0
  %v122 = vadd.f32 0.0, %v121
  %123 = vmatmul.f32.gmra.mxu0 %v102
  %v124 = vpop.f32.mrf.mxu0
  %v125 = vadd.f32 0.0, %v124
  %126 = vdwg.mxu0
  %127 = vst [vmem:[#allocation3] sm:$0xff] %v122
  %128 = vst [vmem:[#allocation3 + $0x8] sm:$0xff] %v125
  %v129 = vld [vmem:[#allocation2 + $0x10] sm:$0xff]
  %v130 = vld [vmem:[#allocation2 + $0x18] sm:$0xff]
  %v131 = vld [vmem:[#allocation2 + $0x20] sm:$0xff]
  %v132 = vld [vmem:[#allocation2 + $0x28] sm:$0xff]
  %v133 = vperm.slane %v131, 0
  %v134 = vmul.f32 %v133, %v129
  %v135 = vmul.f32 %v133, %v130
  %136 = vst [vmem:[#allocation4] sm:$0xff] %v134
  %137 = vst [vmem:[#allocation4 + $0x8] sm:$0xff] %v135
  %v138 = vperm.slane %v131, 1
  %v139 = vmul.f32 %v138, %v129
  %v140 = vmul.f32 %v138, %v130
  %141 = vst [vmem:[#allocation4 + $0x10] sm:$0xff] %v139
  %142 = vst [vmem:[#allocation4 + $0x18] sm:$0xff] %v140
  %v143 = vperm.slane %v131, 2
  %v144 = vmul.f32 %v143, %v129
  %v145 = vmul.f32 %v143, %v130
  %146 = vst [vmem:[#allocation4 + $0x20] sm:$0xff] %v144
  %147 = vst [vmem:[#allocation4 + $0x28] sm:$0xff] %v145
  %v148 = vperm.slane %v131, 3
  %v149 = vmul.f32 %v148, %v129
  %v150 = vmul.f32 %v148, %v130
  %151 = vst [vmem:[#allocation4 + $0x30] sm:$0xff] %v149
  %152 = vst [vmem:[#allocation4 + $0x38] sm:$0xff] %v150
  %v153 = vperm.slane %v131, 4
  %v154 = vmul.f32 %v153, %v129
  %v155 = vmul.f32 %v153, %v130
  %156 = vst [vmem:[#allocation4 + $0x40] sm:$0xff] %v154
  %157 = vst [vmem:[#allocation4 + $0x48] sm:$0xff] %v155
  %v158 = vperm.slane %v131, 5
  %v159 = vmul.f32 %v158, %v129
  %v160 = vmul.f32 %v158, %v130
  %161 = vst [vmem:[#allocation4 + $0x50] sm:$0xff] %v159
  %162 = vst [vmem:[#allocation4 + $0x58] sm:$0xff] %v160
  %v163 = vperm.slane %v131, 6
  %v164 = vmul.f32 %v163, %v129
  %v165 = vmul.f32 %v163, %v130
  %166 = vst [vmem:[#allocation4 + $0x60] sm:$0xff] %v164
  %167 = vst [vmem:[#allocation4 + $0x68] sm:$0xff] %v165
  %v168 = vperm.slane %v131, 7
  %v169 = vmul.f32 %v168, %v129
  %v170 = vmul.f32 %v168, %v130
  %171 = vst [vmem:[#allocation4 + $0x70] sm:$0xff] %v169
  %172 = vst [vmem:[#allocation4 + $0x78] sm:$0xff] %v170
  %v173 = vperm.slane %v132, 0
  %v174 = vmul.f32 %v173, %v129
  %v175 = vmul.f32 %v173, %v130
  %176 = vst [vmem:[#allocation4 + $0x80] sm:$0xff] %v174
  %177 = vst [vmem:[#allocation4 + $0x88] sm:$0xff] %v175
  %v178 = vperm.slane %v132, 1
  %v179 = vmul.f32 %v178, %v129
  %v180 = vmul.f32 %v178, %v130
  %181 = vst [vmem:[#allocation4 + $0x90] sm:$0xff] %v179
  %182 = vst [vmem:[#allocation4 + $0x98] sm:$0xff] %v180
  %v183 = vperm.slane %v132, 2
  %v184 = vmul.f32 %v183, %v129
  %v185 = vmul.f32 %v183, %v130
  %186 = vst [vmem:[#allocation4 + $0xa0] sm:$0xff] %v184
  %187 = vst [vmem:[#allocation4 + $0xa8] sm:$0xff] %v185
  %v188 = vperm.slane %v132, 3
  %v189 = vmul.f32 %v188, %v129
  %v190 = vmul.f32 %v188, %v130
  %191 = vst [vmem:[#allocation4 + $0xb0] sm:$0xff] %v189
  %192 = vst [vmem:[#allocation4 + $0xb8] sm:$0xff] %v190
  %v193 = vperm.slane %v132, 4
  %v194 = vmul.f32 %v193, %v129
  %v195 = vmul.f32 %v193, %v130
  %196 = vst [vmem:[#allocation4 + $0xc0] sm:$0xff] %v194
  %197 = vst [vmem:[#allocation4 + $0xc8] sm:$0xff] %v195
  %v198 = vperm.slane %v132, 5
  %v199 = vmul.f32 %v198, %v129
  %v200 = vmul.f32 %v198, %v130
  %201 = vst [vmem:[#allocation4 + $0xd0] sm:$0xff] %v199
  %202 = vst [vmem:[#allocation4 + $0xd8] sm:$0xff] %v200
  %v203 = vperm.slane %v132, 6
  %v204 = vmul.f32 %v203, %v129
  %v205 = vmul.f32 %v203, %v130
  %206 = vst [vmem:[#allocation4 + $0xe0] sm:$0xff] %v204
  %207 = vst [vmem:[#allocation4 + $0xe8] sm:$0xff] %v205
  %v208 = vperm.slane %v132, 7
  %v209 = vmul.f32 %v208, %v129
  %v210 = vmul.f32 %v208, %v130
  %211 = vst [vmem:[#allocation4 + $0xf0] sm:$0xff] %v209
  %212 = vst [vmem:[#allocation4 + $0xf8] sm:$0xff] %v210
  %v213 = vld [vmem:[%s5] sm:$0xff]
  %v214 = vld [vmem:[%s5 + $0x8] sm:$0xff]
  %v215 = vld [vmem:[%s5 + $0x10] sm:$0xff]
  %v216 = vld [vmem:[%s5 + $0x18] sm:$0xff]
  %v217 = vld [vmem:[#allocation4] sm:$0xff]
  %v218 = vld [vmem:[#allocation4 + $0x8] sm:$0xff]
  %v219 = vld [vmem:[#allocation4 + $0x10] sm:$0xff]
  %v220 = vld [vmem:[#allocation4 + $0x18] sm:$0xff]
  %v221 = vld [vmem:[#allocation4 + $0x20] sm:$0xff]
  %v222 = vld [vmem:[#allocation4 + $0x28] sm:$0xff]
  %v223 = vld [vmem:[#allocation4 + $0x30] sm:$0xff]
  %v224 = vld [vmem:[#allocation4 + $0x38] sm:$0xff]
  %v225 = vld [vmem:[#allocation4 + $0x40] sm:$0xff]
  %v226 = vld [vmem:[#allocation4 + $0x48] sm:$0xff]
  %v227 = vld [vmem:[#allocation4 + $0x50] sm:$0xff]
  %v228 = vld [vmem:[#allocation4 + $0x58] sm:$0xff]
  %v229 = vld [vmem:[#allocation4 + $0x60] sm:$0xff]
  %v230 = vld [vmem:[#allocation4 + $0x68] sm:$0xff]
  %v231 = vld [vmem:[#allocation4 + $0x70] sm:$0xff]
  %v232 = vld [vmem:[#allocation4 + $0x78] sm:$0xff]
  %v233 = vld [vmem:[#allocation4 + $0x80] sm:$0xff]
  %v234 = vld [vmem:[#allocation4 + $0x88] sm:$0xff]
  %v235 = vld [vmem:[#allocation4 + $0x90] sm:$0xff]
  %v236 = vld [vmem:[#allocation4 + $0x98] sm:$0xff]
  %v237 = vld [vmem:[#allocation4 + $0xa0] sm:$0xff]
  %v238 = vld [vmem:[#allocation4 + $0xa8] sm:$0xff]
  %v239 = vld [vmem:[#allocation4 + $0xb0] sm:$0xff]
  %v240 = vld [vmem:[#allocation4 + $0xb8] sm:$0xff]
  %v241 = vld [vmem:[#allocation4 + $0xc0] sm:$0xff]
  %v242 = vld [vmem:[#allocation4 + $0xc8] sm:$0xff]
  %v243 = vld [vmem:[#allocation4 + $0xd0] sm:$0xff]
  %v244 = vld [vmem:[#allocation4 + $0xd8] sm:$0xff]
  %v245 = vld [vmem:[#allocation4 + $0xe0] sm:$0xff]
  %v246 = vld [vmem:[#allocation4 + $0xe8] sm:$0xff]
  %v247 = vld [vmem:[#allocation4 + $0xf0] sm:$0xff]
  %v248 = vld [vmem:[#allocation4 + $0xf8] sm:$0xff]
  %249 = vmatpush.msra.mxu0 %v232
  %250 = vmatpush.msra.mxu0 %v231
  %251 = vmatpush.msra.mxu0 %v230
  %252 = vmatpush.msra.mxu0 %v229
  %253 = vmatpush.msra.mxu0 %v228
  %254 = vmatpush.msra.mxu0 %v227
  %255 = vmatpush.msra.mxu0 %v226
  %256 = vmatpush.msra.mxu0 %v225
  %257 = vmatpush.msra.mxu0 %v224
  %258 = vmatpush.msra.mxu0 %v223
  %259 = vmatpush.msra.mxu0 %v222
  %260 = vmatpush.msra.mxu0 %v221
  %261 = vmatpush.msra.mxu0 %v220
  %262 = vmatpush.msra.mxu0 %v219
  %263 = vmatpush.msra.mxu0 %v218
  %264 = vmatpush.msra.mxu0 %v217
  %265 = vmatmul.f32.gmra.mxu0 %v213
  %v266 = vpop.f32.mrf.mxu0
  %v267 = vadd.f32 0.0, %v266
  %268 = vmatmul.f32.gmra.mxu0 %v215
  %v269 = vpop.f32.mrf.mxu0
  %v270 = vadd.f32 0.0, %v269
  %271 = vdwg.mxu0
  %272 = vmatpush.msra.mxu0 %v248
  %273 = vmatpush.msra.mxu0 %v247
  %274 = vmatpush.msra.mxu0 %v246
  %275 = vmatpush.msra.mxu0 %v245
  %276 = vmatpush.msra.mxu0 %v244
  %277 = vmatpush.msra.mxu0 %v243
  %278 = vmatpush.msra.mxu0 %v242
  %279 = vmatpush.msra.mxu0 %v241
  %280 = vmatpush.msra.mxu0 %v240
  %281 = vmatpush.msra.mxu0 %v239
  %282 = vmatpush.msra.mxu0 %v238
  %283 = vmatpush.msra.mxu0 %v237
  %284 = vmatpush.msra.mxu0 %v236
  %285 = vmatpush.msra.mxu0 %v235
  %286 = vmatpush.msra.mxu0 %v234
  %287 = vmatpush.msra.mxu0 %v233
  %288 = vmatmul.f32.gmra.mxu0 %v214
  %v289 = vpop.f32.mrf.mxu0
  %v290 = vadd.f32 %v267, %v289
  %291 = vmatmul.f32.gmra.mxu0 %v216
  %v292 = vpop.f32.mrf.mxu0
  %v293 = vadd.f32 %v270, %v292
  %294 = vdwg.mxu0
  %295 = vst [vmem:[#allocation3 + $0x10] sm:$0xff] %v290
  %296 = vst [vmem:[#allocation3 + $0x18] sm:$0xff] %v293
  %v297 = vld [vmem:[%s3] sm:$0xff]
  %v298 = vld [vmem:[%s3 + $0x8] sm:$0xff]
  %v299 = vld [vmem:[%s3 + $0x10] sm:$0xff]
  %v300 = vld [vmem:[%s3 + $0x18] sm:$0xff]
  %v301 = vld [vmem:[#allocation3] sm:$0xff]
  %v302 = vld [vmem:[#allocation3 + $0x8] sm:$0xff]
  %v303 = vld [vmem:[#allocation3 + $0x10] sm:$0xff]
  %v304 = vld [vmem:[#allocation3 + $0x18] sm:$0xff]
  %v305 = vld [vmem:[%s1] sm:$0xff]
  %v306 = vld [vmem:[%s1 + $0x8] sm:$0xff]
  %v307 = vld [vmem:[%s1 + $0x10] sm:$0xff]
  %v308 = vld [vmem:[%s1 + $0x18] sm:$0xff]
  %310 = vset.pattern.permute.xlu0 0
  %311 = vperm.xlu0 %310, %v305
  %v312 = vpop.permute.xlu0 %311
  %315 = vset.pattern.permute.xlu0 0
  %316 = vperm.xlu0 %315, %v306
  %v317 = vpop.permute.xlu0 %316
  %320 = vset.pattern.permute.xlu0 0
  %321 = vperm.xlu0 %320, %v307
  %v322 = vpop.permute.xlu0 %321
  %325 = vset.pattern.permute.xlu0 0
  %326 = vperm.xlu0 %325, %v308
  %v327 = vpop.permute.xlu0 %326
  %v330 = vsel %vm33, %v297, 0
  %v333 = vsel %vm33, %v298, 0
  %v336 = vsel %vm33, %v299, 0
  %v339 = vsel %vm33, %v300, 0
  %341 = vmatpush.msra.mxu0 0.0
  %342 = vmatpush.msra.mxu0 0.0
  %343 = vmatpush.msra.mxu0 0.0
  %344 = vmatpush.msra.mxu0 0.0
  %345 = vmatpush.msra.mxu0 0.0
  %346 = vmatpush.msra.mxu0 0.0
  %347 = vmatpush.msra.mxu0 0.0
  %348 = vmatpush.msra.mxu0 0.0
  %349 = vmatpush.msra.mxu0 0.0
  %350 = vmatpush.msra.mxu0 0.0
  %351 = vmatpush.msra.mxu0 0.0
  %352 = vmatpush.msra.mxu0 0.0
  %353 = vmatpush.msra.mxu0 %v304
  %354 = vmatpush.msra.mxu0 %v303
  %355 = vmatpush.msra.mxu0 %v302
  %356 = vmatpush.msra.mxu0 %v301
  %357 = vmatmul.f32.gmra.mxu0 %v330
  %v358 = vpop.f32.mrf.mxu0
  %v359 = vadd.f32 %v312, %v358
  %360 = vmatmul.f32.gmra.mxu0 %v333
  %v361 = vpop.f32.mrf.mxu0
  %v362 = vadd.f32 %v317, %v361
  %363 = vmatmul.f32.gmra.mxu0 %v336
  %v364 = vpop.f32.mrf.mxu0
  %v365 = vadd.f32 %v322, %v364
  %366 = vmatmul.f32.gmra.mxu0 %v339
  %v367 = vpop.f32.mrf.mxu0
  %v368 = vadd.f32 %v327, %v367
  %369 = vdwg.mxu0
  %370 = vst [vmem:[%s6] sm:$0xff] %v359
  %371 = vst [vmem:[%s6 + $0x8] sm:$0xff] %v362
  %372 = vst [vmem:[%s6 + $0x10] sm:$0xff] %v365
  %373 = vst [vmem:[%s6 + $0x18] sm:$0xff] %v368
  // Predicated region
  $region26: #{_fwd.1} parent=0 // pred_check
    _
  $region27: #{_fwd.1} parent=0 // pred_check_branch
    %375 = sbr.rel (0) target = $region29
  $region28: #{_fwd.1} parent=0 // pred_region
    _
  $region29: #{_fwd.1} parent=0 // pred_fallthru
    _
  // Predicated region
  $region30: #{_fwd.1} parent=0 // pred_check
    _
  $region31: #{_fwd.1} parent=0 // pred_check_branch
    %377 = sbr.rel (0) target = $region33
  $region32: #{_fwd.1} parent=0 // pred_region
    _
  $region33: #{_fwd.1} parent=0 // pred_fallthru
    _

// kernel: _fwd.1
$region0: #{_fwd.1}
  #allocation0 [shape = 'u32[]', space=smem, size = 0x4, offset = 0x4, fixed_abs, tag = 'smem constant byte address 0x4 - core index']
  #allocation1 [shape = 'u32[72,128]{1,0:T(1,128)}', space=vmem, size = 0x9000, scoped, tag = 'internal scratch']
  #allocation2 [shape = 'f32[48,128]{1,0:T(8,128)}', space=vmem, size = 0x6000, scoped, tag = 'scratch operand']
  #allocation3 [shape = 'f32[32,128]{1,0:T(8,128)}', space=vmem, size = 0x4000, scoped, tag = 'scratch operand']
  #allocation4 [shape = 'f32[256,128]{1,0:T(8,128)}', space=vmem, size = 0x20000, scoped, tag = 'scratch operand']
  %s0 = inlined_call_operand.vmem [shape: f32[32,128], index: 0, kind: input, shape index: {}]
  %s1 = inlined_call_operand.vmem [shape: f32[32,1], index: 1, kind: input, shape index: {}]
  %s2 = inlined_call_operand.vmem [shape: f32[48,32], index: 2, kind: input, shape index: {}]
  %s3 = inlined_call_operand.vmem [shape: f32[32,32], index: 3, kind: input, shape index: {}]
  %s4 = inlined_call_operand.vmem [shape: f32[16,16], index: 4, kind: input, shape index: {}]
  %s5 = inlined_call_operand.vmem [shape: f32[16,256], index: 5, kind: input, shape index: {}]
  %s6 = inlined_call_operand.vmem [shape: f32[32,128], index: 6, kind: output, shape index: {}]
  %s7 = sld [smem:[#allocation0]]
  $region34: #{_fwd.1} parent=0
    _
  %s9 = ssub.s32 1, %s7
  %s10 = scalar_select 0, %s9, %s7
  // Predicated region
  $region2: #{_fwd.1} parent=0 // pred_check
    _
  $region3: #{_fwd.1} parent=0 // pred_check_branch
    %12 = sbr.rel (0) target = $region5
  $region4: #{_fwd.1} parent=0 // pred_region
    _
  $region5: #{_fwd.1} parent=0 // pred_fallthru
    _
  // Predicated region
  $region6: #{_fwd.1} parent=0 // pred_check
    _
  $region7: #{_fwd.1} parent=0 // pred_check_branch
    %14 = sbr.rel (0) target = $region9
  $region8: #{_fwd.1} parent=0 // pred_region
    _
  $region9: #{_fwd.1} parent=0 // pred_fallthru
    _
  // Predicated region
  $region10: #{_fwd.1} parent=0 // pred_check
    _
  $region11: #{_fwd.1} parent=0 // pred_check_branch
    %16 = sbr.rel (0) target = $region13
  $region12: #{_fwd.1} parent=0 // pred_region
    _
  $region13: #{_fwd.1} parent=0 // pred_fallthru
    _
  // Predicated region
  $region14: #{_fwd.1} parent=0 // pred_check
    _
  $region15: #{_fwd.1} parent=0 // pred_check_branch
    %18 = sbr.rel (0) target = $region17
  $region16: #{_fwd.1} parent=0 // pred_region
    _
  $region17: #{_fwd.1} parent=0 // pred_fallthru
    _
  // Predicated region
  $region18: #{_fwd.1} parent=0 // pred_check
    _
  $region19: #{_fwd.1} parent=0 // pred_check_branch
    %20 = sbr.rel (0) target = $region21
  $region20: #{_fwd.1} parent=0 // pred_region
    _
  $region21: #{_fwd.1} parent=0 // pred_fallthru
    _
  // Predicated region
  $region22: #{_fwd.1} parent=0 // pred_check
    _
  $region23: #{_fwd.1} parent=0 // pred_check_branch
    %22 = sbr.rel (0) target = $region25
  $region24: #{_fwd.1} parent=0 // pred_region
    _
  $region25: #{_fwd.1} parent=0 // pred_fallthru
    _
  %v23 = vld [vmem:[%s2] sm:$0xff]
  %v24 = vld [vmem:[%s2 + $0x8] sm:$0xff]
  %v25 = vld [vmem:[%s2 + $0x10] sm:$0xff]
  %v26 = vld [vmem:[%s2 + $0x18] sm:$0xff]
  %v27 = vld [vmem:[%s2 + $0x20] sm:$0xff]
  %v28 = vld [vmem:[%s2 + $0x28] sm:$0xff]
  %v29 = vld [vmem:[%s0] sm:$0xff]
  %v30 = vld [vmem:[%s0 + $0x8] sm:$0xff]
  %v31 = vld [vmem:[%s0 + $0x10] sm:$0xff]
  %v32 = vld [vmem:[%s0 + $0x18] sm:$0xff]
  %vm33 = vcmask 261120
  %v35 = vsel %vm33, %v23, 0
  %v38 = vsel %vm33, %v24, 0
  %v41 = vsel %vm33, %v25, 0
  %v44 = vsel %vm33, %v26, 0
  %v47 = vsel %vm33, %v27, 0
  %v50 = vsel %vm33, %v28, 0
  %52 = vmatpush.msra.mxu0 0.0
  %53 = vmatpush.msra.mxu0 0.0
  %54 = vmatpush.msra.mxu0 0.0
  %55 = vmatpush.msra.mxu0 0.0
  %56 = vmatpush.msra.mxu0 0.0
  %57 = vmatpush.msra.mxu0 0.0
  %58 = vmatpush.msra.mxu0 0.0
  %59 = vmatpush.msra.mxu0 0.0
  %60 = vmatpush.msra.mxu0 0.0
  %61 = vmatpush.msra.mxu0 0.0
  %62 = vmatpush.msra.mxu0 0.0
  %63 = vmatpush.msra.mxu0 0.0
  %64 = vmatpush.msra.mxu0 %v32
  %65 = vmatpush.msra.mxu0 %v31
  %66 = vmatpush.msra.mxu0 %v30
  %67 = vmatpush.msra.mxu0 %v29
  %68 = vmatmul.f32.gmra.mxu0 %v35
  %v69 = vpop.f32.mrf.mxu0
  %v70 = vadd.f32 0.0, %v69
  %71 = vmatmul.f32.gmra.mxu0 %v38
  %v72 = vpop.f32.mrf.mxu0
  %v73 = vadd.f32 0.0, %v72
  %74 = vmatmul.f32.gmra.mxu0 %v41
  %v75 = vpop.f32.mrf.mxu0
  %v76 = vadd.f32 0.0, %v75
  %77 = vmatmul.f32.gmra.mxu0 %v44
  %v78 = vpop.f32.mrf.mxu0
  %v79 = vadd.f32 0.0, %v78
  %80 = vmatmul.f32.gmra.mxu0 %v47
  %v81 = vpop.f32.mrf.mxu0
  %v82 = vadd.f32 0.0, %v81
  %83 = vmatmul.f32.gmra.mxu0 %v50
  %v84 = vpop.f32.mrf.mxu0
  %v85 = vadd.f32 0.0, %v84
  %86 = vdwg.mxu0
  %87 = vst [vmem:[#allocation2] sm:$0xff] %v70
  %88 = vst [vmem:[#allocation2 + $0x8] sm:$0xff] %v73
  %89 = vst [vmem:[#allocation2 + $0x10] sm:$0xff] %v76
  %90 = vst [vmem:[#allocation2 + $0x18] sm:$0xff] %v79
  %91 = vst [vmem:[#allocation2 + $0x20] sm:$0xff] %v82
  %92 = vst [vmem:[#allocation2 + $0x28] sm:$0xff] %v85
  %v93 = vld [vmem:[%s4] sm:$0xff]
  %v94 = vld [vmem:[%s4 + $0x8] sm:$0xff]
  %v95 = vld [vmem:[#allocation2] sm:$0xff]
  %v96 = vld [vmem:[#allocation2 + $0x8] sm:$0xff]
  %vm97 = vcmask 130048
  %v99 = vsel %vm97, %v93, 0
  %v102 = vsel %vm97, %v94, 0
  %104 = vmatpush.msra.mxu0 0.0
  %105 = vmatpush.msra.mxu0 0.0
  %106 = vmatpush.msra.mxu0 0.0
  %107 = vmatpush.msra.mxu0 0.0
  %108 = vmatpush.msra.mxu0 0.0
  %109 = vmatpush.msra.mxu0 0.0
  %110 = vmatpush.msra.mxu0 0.0
  %111 = vmatpush.msra.mxu0 0.0
  %112 = vmatpush.msra.mxu0 0.0
  %113 = vmatpush.msra.mxu0 0.0
  %114 = vmatpush.msra.mxu0 0.0
  %115 = vmatpush.msra.mxu0 0.0
  %116 = vmatpush.msra.mxu0 0.0
  %117 = vmatpush.msra.mxu0 0.0
  %118 = vmatpush.msra.mxu0 %v96
  %119 = vmatpush.msra.mxu0 %v95
  %120 = vmatmul.f32.gmra.mxu0 %v99
  %v121 = vpop.f32.mrf.mxu0
  %v122 = vadd.f32 0.0, %v121
  %123 = vmatmul.f32.gmra.mxu0 %v102
  %v124 = vpop.f32.mrf.mxu0
  %v125 = vadd.f32 0.0, %v124
  %126 = vdwg.mxu0
  %127 = vst [vmem:[#allocation3] sm:$0xff] %v122
  %128 = vst [vmem:[#allocation3 + $0x8] sm:$0xff] %v125
  %v129 = vld [vmem:[#allocation2 + $0x10] sm:$0xff]
  %v130 = vld [vmem:[#allocation2 + $0x18] sm:$0xff]
  %v131 = vld [vmem:[#allocation2 + $0x20] sm:$0xff]
  %v132 = vld [vmem:[#allocation2 + $0x28] sm:$0xff]
  %v133 = vperm.slane %v131, 0
  %v134 = vmul.f32 %v133, %v129
  %v135 = vmul.f32 %v133, %v130
  %136 = vst [vmem:[#allocation4] sm:$0xff] %v134
  %137 = vst [vmem:[#allocation4 + $0x8] sm:$0xff] %v135
  %v138 = vperm.slane %v131, 1
  %v139 = vmul.f32 %v138, %v129
  %v140 = vmul.f32 %v138, %v130
  %141 = vst [vmem:[#allocation4 + $0x10] sm:$0xff] %v139
  %142 = vst [vmem:[#allocation4 + $0x18] sm:$0xff] %v140
  %v143 = vperm.slane %v131, 2
  %v144 = vmul.f32 %v143, %v129
  %v145 = vmul.f32 %v143, %v130
  %146 = vst [vmem:[#allocation4 + $0x20] sm:$0xff] %v144
  %147 = vst [vmem:[#allocation4 + $0x28] sm:$0xff] %v145
  %v148 = vperm.slane %v131, 3
  %v149 = vmul.f32 %v148, %v129
  %v150 = vmul.f32 %v148, %v130
  %151 = vst [vmem:[#allocation4 + $0x30] sm:$0xff] %v149
  %152 = vst [vmem:[#allocation4 + $0x38] sm:$0xff] %v150
  %v153 = vperm.slane %v131, 4
  %v154 = vmul.f32 %v153, %v129
  %v155 = vmul.f32 %v153, %v130
  %156 = vst [vmem:[#allocation4 + $0x40] sm:$0xff] %v154
  %157 = vst [vmem:[#allocation4 + $0x48] sm:$0xff] %v155
  %v158 = vperm.slane %v131, 5
  %v159 = vmul.f32 %v158, %v129
  %v160 = vmul.f32 %v158, %v130
  %161 = vst [vmem:[#allocation4 + $0x50] sm:$0xff] %v159
  %162 = vst [vmem:[#allocation4 + $0x58] sm:$0xff] %v160
  %v163 = vperm.slane %v131, 6
  %v164 = vmul.f32 %v163, %v129
  %v165 = vmul.f32 %v163, %v130
  %166 = vst [vmem:[#allocation4 + $0x60] sm:$0xff] %v164
  %167 = vst [vmem:[#allocation4 + $0x68] sm:$0xff] %v165
  %v168 = vperm.slane %v131, 7
  %v169 = vmul.f32 %v168, %v129
  %v170 = vmul.f32 %v168, %v130
  %171 = vst [vmem:[#allocation4 + $0x70] sm:$0xff] %v169
  %172 = vst [vmem:[#allocation4 + $0x78] sm:$0xff] %v170
  %v173 = vperm.slane %v132, 0
  %v174 = vmul.f32 %v173, %v129
  %v175 = vmul.f32 %v173, %v130
  %176 = vst [vmem:[#allocation4 + $0x80] sm:$0xff] %v174
  %177 = vst [vmem:[#allocation4 + $0x88] sm:$0xff] %v175
  %v178 = vperm.slane %v132, 1
  %v179 = vmul.f32 %v178, %v129
  %v180 = vmul.f32 %v178, %v130
  %181 = vst [vmem:[#allocation4 + $0x90] sm:$0xff] %v179
  %182 = vst [vmem:[#allocation4 + $0x98] sm:$0xff] %v180
  %v183 = vperm.slane %v132, 2
  %v184 = vmul.f32 %v183, %v129
  %v185 = vmul.f32 %v183, %v130
  %186 = vst [vmem:[#allocation4 + $0xa0] sm:$0xff] %v184
  %187 = vst [vmem:[#allocation4 + $0xa8] sm:$0xff] %v185
  %v188 = vperm.slane %v132, 3
  %v189 = vmul.f32 %v188, %v129
  %v190 = vmul.f32 %v188, %v130
  %191 = vst [vmem:[#allocation4 + $0xb0] sm:$0xff] %v189
  %192 = vst [vmem:[#allocation4 + $0xb8] sm:$0xff] %v190
  %v193 = vperm.slane %v132, 4
  %v194 = vmul.f32 %v193, %v129
  %v195 = vmul.f32 %v193, %v130
  %196 = vst [vmem:[#allocation4 + $0xc0] sm:$0xff] %v194
  %197 = vst [vmem:[#allocation4 + $0xc8] sm:$0xff] %v195
  %v198 = vperm.slane %v132, 5
  %v199 = vmul.f32 %v198, %v129
  %v200 = vmul.f32 %v198, %v130
  %201 = vst [vmem:[#allocation4 + $0xd0] sm:$0xff] %v199
  %202 = vst [vmem:[#allocation4 + $0xd8] sm:$0xff] %v200
  %v203 = vperm.slane %v132, 6
  %v204 = vmul.f32 %v203, %v129
  %v205 = vmul.f32 %v203, %v130
  %206 = vst [vmem:[#allocation4 + $0xe0] sm:$0xff] %v204
  %207 = vst [vmem:[#allocation4 + $0xe8] sm:$0xff] %v205
  %v208 = vperm.slane %v132, 7
  %v209 = vmul.f32 %v208, %v129
  %v210 = vmul.f32 %v208, %v130
  %211 = vst [vmem:[#allocation4 + $0xf0] sm:$0xff] %v209
  %212 = vst [vmem:[#allocation4 + $0xf8] sm:$0xff] %v210
  %v213 = vld [vmem:[%s5] sm:$0xff]
  %v214 = vld [vmem:[%s5 + $0x8] sm:$0xff]
  %v215 = vld [vmem:[%s5 + $0x10] sm:$0xff]
  %v216 = vld [vmem:[%s5 + $0x18] sm:$0xff]
  %v217 = vld [vmem:[#allocation4] sm:$0xff]
  %v218 = vld [vmem:[#allocation4 + $0x8] sm:$0xff]
  %v219 = vld [vmem:[#allocation4 + $0x10] sm:$0xff]
  %v220 = vld [vmem:[#allocation4 + $0x18] sm:$0xff]
  %v221 = vld [vmem:[#allocation4 + $0x20] sm:$0xff]
  %v222 = vld [vmem:[#allocation4 + $0x28] sm:$0xff]
  %v223 = vld [vmem:[#allocation4 + $0x30] sm:$0xff]
  %v224 = vld [vmem:[#allocation4 + $0x38] sm:$0xff]
  %v225 = vld [vmem:[#allocation4 + $0x40] sm:$0xff]
  %v226 = vld [vmem:[#allocation4 + $0x48] sm:$0xff]
  %v227 = vld [vmem:[#allocation4 + $0x50] sm:$0xff]
  %v228 = vld [vmem:[#allocation4 + $0x58] sm:$0xff]
  %v229 = vld [vmem:[#allocation4 + $0x60] sm:$0xff]
  %v230 = vld [vmem:[#allocation4 + $0x68] sm:$0xff]
  %v231 = vld [vmem:[#allocation4 + $0x70] sm:$0xff]
  %v232 = vld [vmem:[#allocation4 + $0x78] sm:$0xff]
  %v233 = vld [vmem:[#allocation4 + $0x80] sm:$0xff]
  %v234 = vld [vmem:[#allocation4 + $0x88] sm:$0xff]
  %v235 = vld [vmem:[#allocation4 + $0x90] sm:$0xff]
  %v236 = vld [vmem:[#allocation4 + $0x98] sm:$0xff]
  %v237 = vld [vmem:[#allocation4 + $0xa0] sm:$0xff]
  %v238 = vld [vmem:[#allocation4 + $0xa8] sm:$0xff]
  %v239 = vld [vmem:[#allocation4 + $0xb0] sm:$0xff]
  %v240 = vld [vmem:[#allocation4 + $0xb8] sm:$0xff]
  %v241 = vld [vmem:[#allocation4 + $0xc0] sm:$0xff]
  %v242 = vld [vmem:[#allocation4 + $0xc8] sm:$0xff]
  %v243 = vld [vmem:[#allocation4 + $0xd0] sm:$0xff]
  %v244 = vld [vmem:[#allocation4 + $0xd8] sm:$0xff]
  %v245 = vld [vmem:[#allocation4 + $0xe0] sm:$0xff]
  %v246 = vld [vmem:[#allocation4 + $0xe8] sm:$0xff]
  %v247 = vld [vmem:[#allocation4 + $0xf0] sm:$0xff]
  %v248 = vld [vmem:[#allocation4 + $0xf8] sm:$0xff]
  %249 = vmatpush.msra.mxu0 %v232
  %250 = vmatpush.msra.mxu0 %v231
  %251 = vmatpush.msra.mxu0 %v230
  %252 = vmatpush.msra.mxu0 %v229
  %253 = vmatpush.msra.mxu0 %v228
  %254 = vmatpush.msra.mxu0 %v227
  %255 = vmatpush.msra.mxu0 %v226
  %256 = vmatpush.msra.mxu0 %v225
  %257 = vmatpush.msra.mxu0 %v224
  %258 = vmatpush.msra.mxu0 %v223
  %259 = vmatpush.msra.mxu0 %v222
  %260 = vmatpush.msra.mxu0 %v221
  %261 = vmatpush.msra.mxu0 %v220
  %262 = vmatpush.msra.mxu0 %v219
  %263 = vmatpush.msra.mxu0 %v218
  %264 = vmatpush.msra.mxu0 %v217
  %265 = vmatmul.f32.gmra.mxu0 %v213
  %v266 = vpop.f32.mrf.mxu0
  %v267 = vadd.f32 0.0, %v266
  %268 = vmatmul.f32.gmra.mxu0 %v215
  %v269 = vpop.f32.mrf.mxu0
  %v270 = vadd.f32 0.0, %v269
  %271 = vdwg.mxu0
  %272 = vmatpush.msra.mxu0 %v248
  %273 = vmatpush.msra.mxu0 %v247
  %274 = vmatpush.msra.mxu0 %v246
  %275 = vmatpush.msra.mxu0 %v245
  %276 = vmatpush.msra.mxu0 %v244
  %277 = vmatpush.msra.mxu0 %v243
  %278 = vmatpush.msra.mxu0 %v242
  %279 = vmatpush.msra.mxu0 %v241
  %280 = vmatpush.msra.mxu0 %v240
  %281 = vmatpush.msra.mxu0 %v239
  %282 = vmatpush.msra.mxu0 %v238
  %283 = vmatpush.msra.mxu0 %v237
  %284 = vmatpush.msra.mxu0 %v236
  %285 = vmatpush.msra.mxu0 %v235
  %286 = vmatpush.msra.mxu0 %v234
  %287 = vmatpush.msra.mxu0 %v233
  %288 = vmatmul.f32.gmra.mxu0 %v214
  %v289 = vpop.f32.mrf.mxu0
  %v290 = vadd.f32 %v267, %v289
  %291 = vmatmul.f32.gmra.mxu0 %v216
  %v292 = vpop.f32.mrf.mxu0
  %v293 = vadd.f32 %v270, %v292
  %294 = vdwg.mxu0
  %295 = vst [vmem:[#allocation3 + $0x10] sm:$0xff] %v290
  %296 = vst [vmem:[#allocation3 + $0x18] sm:$0xff] %v293
  %v297 = vld [vmem:[%s3] sm:$0xff]
  %v298 = vld [vmem:[%s3 + $0x8] sm:$0xff]
  %v299 = vld [vmem:[%s3 + $0x10] sm:$0xff]
  %v300 = vld [vmem:[%s3 + $0x18] sm:$0xff]
  %v301 = vld [vmem:[#allocation3] sm:$0xff]
  %v302 = vld [vmem:[#allocation3 + $0x8] sm:$0xff]
  %v303 = vld [vmem:[#allocation3 + $0x10] sm:$0xff]
  %v304 = vld [vmem:[#allocation3 + $0x18] sm:$0xff]
  %v305 = vld [vmem:[%s1] sm:$0xff]
  %v306 = vld [vmem:[%s1 + $0x8] sm:$0xff]
  %v307 = vld [vmem:[%s1 + $0x10] sm:$0xff]
  %v308 = vld [vmem:[%s1 + $0x18] sm:$0xff]
  %310 = vset.pattern.permute.xlu0 0
  %311 = vperm.xlu0 %310, %v305
  %v312 = vpop.permute.xlu0 %311
  %315 = vset.pattern.permute.xlu0 0
  %316 = vperm.xlu0 %315, %v306
  %v317 = vpop.permute.xlu0 %316
  %320 = vset.pattern.permute.xlu0 0
  %321 = vperm.xlu0 %320, %v307
  %v322 = vpop.permute.xlu0 %321
  %325 = vset.pattern.permute.xlu0 0
  %326 = vperm.xlu0 %325, %v308
  %v327 = vpop.permute.xlu0 %326
  %v330 = vsel %vm33, %v297, 0
  %v333 = vsel %vm33, %v298, 0
  %v336 = vsel %vm33, %v299, 0
  %v339 = vsel %vm33, %v300, 0
  %341 = vmatpush.msra.mxu0 0.0
  %342 = vmatpush.msra.mxu0 0.0
  %343 = vmatpush.msra.mxu0 0.0
  %344 = vmatpush.msra.mxu0 0.0
  %345 = vmatpush.msra.mxu0 0.0
  %346 = vmatpush.msra.mxu0 0.0
  %347 = vmatpush.msra.mxu0 0.0
  %348 = vmatpush.msra.mxu0 0.0
  %349 = vmatpush.msra.mxu0 0.0
  %350 = vmatpush.msra.mxu0 0.0
  %351 = vmatpush.msra.mxu0 0.0
  %352 = vmatpush.msra.mxu0 0.0
  %353 = vmatpush.msra.mxu0 %v304
  %354 = vmatpush.msra.mxu0 %v303
  %355 = vmatpush.msra.mxu0 %v302
  %356 = vmatpush.msra.mxu0 %v301
  %357 = vmatmul.f32.gmra.mxu0 %v330
  %v358 = vpop.f32.mrf.mxu0
  %v359 = vadd.f32 %v312, %v358
  %360 = vmatmul.f32.gmra.mxu0 %v333
  %v361 = vpop.f32.mrf.mxu0
  %v362 = vadd.f32 %v317, %v361
  %363 = vmatmul.f32.gmra.mxu0 %v336
  %v364 = vpop.f32.mrf.mxu0
  %v365 = vadd.f32 %v322, %v364
  %366 = vmatmul.f32.gmra.mxu0 %v339
  %v367 = vpop.f32.mrf.mxu0
  %v368 = vadd.f32 %v327, %v367
  %369 = vdwg.mxu0
  %370 = vst [vmem:[%s6] sm:$0xff] %v359
  %371 = vst [vmem:[%s6 + $0x8] sm:$0xff] %v362
  %372 = vst [vmem:[%s6 + $0x10] sm:$0xff] %v365
  %373 = vst [vmem:[%s6 + $0x18] sm:$0xff] %v368
  // Predicated region
  $region26: #{_fwd.1} parent=0 // pred_check
    _
  $region27: #{_fwd.1} parent=0 // pred_check_branch
    %375 = sbr.rel (0) target = $region29
  $region28: #{_fwd.1} parent=0 // pred_region
    _
  $region29: #{_fwd.1} parent=0 // pred_fallthru
    _
  // Predicated region
  $region30: #{_fwd.1} parent=0 // pred_check
    _
  $region31: #{_fwd.1} parent=0 // pred_check_branch
    %377 = sbr.rel (0) target = $region33
  $region32: #{_fwd.1} parent=0 // pred_region
    _
  $region33: #{_fwd.1} parent=0 // pred_fallthru
    _

</llo_original>
